<compile_context>
chip_gen: v7x
topology: tpu7x:2x2x1
jax: 0.10.0
libtpu: 0.0.40
codegen_flags: <defaults>
</compile_context>

<pallas_src>
import jax
import jax.numpy as jnp
import numpy as np
from jax import lax
from jax.experimental import pallas as pl
from jax.experimental.pallas import tpu as pltpu

# ---------------- model hyper-parameters (synthetic, small) -----------------
B = 2             # batch
C = 3             # input channels (RGB)
CP = 8            # channels padded (sublane-friendly MXU K)
H = W = 16        # spatial
HW = H * W
D = 128           # hidden size
NQ = 16           # number of object queries
NCLS = 9          # num_labels + 1 ("no object" class)
NBOX = 4          # (cx, cy, w, h)
SLAB = 128        # lane-dense packed output width ([logits | boxes | pad])


# ------------------------------- Pallas kernel -------------------------------
def detr_kernel(x_ref, pw_ref, pb_ref, q_ref, qer_ref, wkv_ref, wo_ref,
                b1w_ref, b1b_ref, wcls_ref, wbox_ref, bsl_ref, out_ref):
    # x_ref: (B*HW, CP) channel-padded, channels-last pixels for the whole batch.
    x = x_ref[...]

    # Backbone: 1x1 conv == per-pixel linear projection to hidden dim.
    feat = jnp.dot(x, pw_ref[...],
                   preferred_element_type=jnp.float32) + pb_ref[...]   # (B*HW, D)

    # Fused K/V projection: one (D, 2D) matmul, lane-tile-aligned slices.
    kv = jnp.dot(feat, wkv_ref[...],
                 preferred_element_type=jnp.float32)                   # (B*HW, 2D)
    k = kv[:, :D]
    v = kv[:, D:]

    # Attention scores for all images at once.  q already carries the
    # 1/sqrt(D) scale; dot_general contracts the last dims (no k.T transpose).
    scores = lax.dot_general(
        q_ref[...], k,
        dimension_numbers=(((1,), (1,)), ((), ())),
        preferred_element_type=jnp.float32)                            # (NQ, B*HW)

    # Per-image softmax + attention (B is tiny and static -> unrolled loop,
    # all slices land on lane/sublane tile boundaries: HW = 256).
    attn_parts = []
    for b in range(B):
        s = scores[:, b * HW:(b + 1) * HW]                             # (NQ, HW)
        s = s - jnp.max(s, axis=-1, keepdims=True)
        p = jnp.exp(s)
        p = p * pl.reciprocal(jnp.sum(p, axis=-1, keepdims=True), approx=False)
        attn_parts.append(
            jnp.dot(p, v[b * HW:(b + 1) * HW, :],
                    preferred_element_type=jnp.float32))               # (NQ, D)
    attn = jnp.concatenate(attn_parts, axis=0)                         # (B*NQ, D)

    # Output projection + residual with the (tiled) query embeddings.
    dec = jnp.dot(attn, wo_ref[...],
                  preferred_element_type=jnp.float32) + qer_ref[...]   # (B*NQ, D)

    # Box-MLP layer 1.
    hdn = jnp.maximum(
        jnp.dot(dec, b1w_ref[...],
                preferred_element_type=jnp.float32) + b1b_ref[...], 0.0)  # (B*NQ, D)

    # Fully lane-dense head slab:
    #   lanes [0:NCLS)           -> class logits   (dec @ cw + cb)
    #   lanes [NCLS:NCLS+NBOX)   -> box activations (hdn @ b2w + b2b)
    fin = (jnp.dot(dec, wcls_ref[...], preferred_element_type=jnp.float32)
           + jnp.dot(hdn, wbox_ref[...], preferred_element_type=jnp.float32)
           + bsl_ref[...])                                             # (B*NQ, SLAB)

    lane = lax.broadcasted_iota(jnp.int32, fin.shape, 1)
    box_lane = (lane >= NCLS) & (lane < NCLS + NBOX)
    out_ref[...] = jnp.where(box_lane, jax.nn.sigmoid(fin), fin)       # dense vst


# ------------------------------- wrapper --------------------------------------
def prepare_params(params):
    """One-time constant folding / fusion of the raw weights."""
    (qe, pw, pb, wq, wk, wv, wo, cw, cb, b1w, b1b, b2w, b2b) = params
    pw_pad = jnp.pad(pw, ((0, CP - C), (0, 0)))                      # (CP, D)
    q_pre = (qe @ wq) * jnp.float32(1.0 / np.sqrt(D))                # (NQ, D)
    qe_rep = jnp.tile(qe, (B, 1))                                    # (B*NQ, D)
    wkv = jnp.concatenate([wk, wv], axis=1)                          # (D, 2D)
    # Class head embedded in lanes [0:NCLS) of a (D, SLAB) weight.
    w_cls_slab = jnp.pad(cw, ((0, 0), (0, SLAB - NCLS)))             # (D, SLAB)
    # Box-MLP layer 2 embedded in lanes [NCLS:NCLS+NBOX).
    w_box_slab = jnp.pad(b2w, ((0, 0), (NCLS, SLAB - NCLS - NBOX)))  # (D, SLAB)
    bias_slab = jnp.concatenate(
        [cb, b2b, jnp.zeros((1, SLAB - NCLS - NBOX), jnp.float32)], axis=1)  # (1, SLAB)
    return (pw_pad, pb, q_pre, qe_rep, wkv, wo, b1w, b1b,
            w_cls_slab, w_box_slab, bias_slab)


@jax.jit
def object_detection_forward(pixel_values_nchw, prepared):
    """Mirrors ObjectDetectionWrapper.forward: returns (logits, pred_boxes)."""
    (pw_pad, pb, q_pre, qe_rep, wkv, wo, b1w, b1b,
     w_cls_slab, w_box_slab, bias_slab) = prepared

    # NCHW -> (B*HW, C) channels-last, then pad channels to CP for a
    # lane/sublane-friendly kernel input tile.
    x = jnp.transpose(pixel_values_nchw, (0, 2, 3, 1)).reshape(B * HW, C)
    x = jnp.pad(x, ((0, 0), (0, CP - C)))

    vmem = pl.BlockSpec(memory_space=pltpu.MemorySpace.VMEM)
    slab = pl.pallas_call(
        detr_kernel,
        out_shape=jax.ShapeDtypeStruct((B * NQ, SLAB), jnp.float32),
        in_specs=[vmem] * 12,
        out_specs=vmem,
    )(x, pw_pad, pb, q_pre, qe_rep, wkv, wo, b1w, b1b,
      w_cls_slab, w_box_slab, bias_slab)

    slab = slab.reshape(B, NQ, SLAB)
    logits = slab[..., :NCLS]
    boxes = slab[..., NCLS:NCLS + NBOX]
    return logits, boxes


# ------------------------------ reference (pure JAX) ---------------------------
def reference_forward(pixel_values_nchw, params):
    x = jnp.transpose(pixel_values_nchw, (0, 2, 3, 1)).reshape(B, HW, C)
    (qe, pw, pb, wq, wk, wv, wo, cw, cb, b1w, b1b, b2w, b2b) = params
    feat = x @ pw + pb                                   # (B, HW, D)
    q = qe @ wq                                          # (NQ, D)
    k = feat @ wk                                        # (B, HW, D)
    v = feat @ wv                                        # (B, HW, D)
    scores = jnp.einsum("qd,bkd->bqk", q, k) / np.sqrt(D)
    p = jax.nn.softmax(scores, axis=-1)
    attn = jnp.einsum("bqk,bkd->bqd", p, v)
    dec = attn @ wo + qe
    logits = dec @ cw + cb
    hdn = jnp.maximum(dec @ b1w + b1b, 0.0)
    boxes = jax.nn.sigmoid(hdn @ b2w + b2b)
    return logits, boxes


# ------------------------------ param init -------------------------------------
def init_params(key):
    ks = jax.random.split(key, 13)
    s = lambda k, shape, scale: (scale * jax.random.normal(k, shape)).astype(jnp.float32)
    qe = s(ks[0], (NQ, D), 0.02)
    pw = s(ks[1], (C, D), 0.1)
    pb = s(ks[2], (1, D), 0.01)
    wq = s(ks[3], (D, D), 1.0 / np.sqrt(D))
    wk = s(ks[4], (D, D), 1.0 / np.sqrt(D))
    wv = s(ks[5], (D, D), 1.0 / np.sqrt(D))
    wo = s(ks[6], (D, D), 1.0 / np.sqrt(D))
    cw = s(ks[7], (D, NCLS), 1.0 / np.sqrt(D))
    cb = s(ks[8], (1, NCLS), 0.01)
    b1w = s(ks[9], (D, D), 1.0 / np.sqrt(D))
    b1b = s(ks[10], (1, D), 0.01)
    b2w = s(ks[11], (D, NBOX), 1.0 / np.sqrt(D))
    b2b = s(ks[12], (1, NBOX), 0.01)
    return (qe, pw, pb, wq, wk, wv, wo, cw, cb, b1w, b1b, b2w, b2b)


if __name__ == "__main__":
    key = jax.random.PRNGKey(0)
    k_x, k_p = jax.random.split(key)
    pixel_values = jax.random.normal(k_x, (B, C, H, W), dtype=jnp.float32)  # NCHW
    params = init_params(k_p)
    prepared = prepare_params(params)

    logits, boxes = object_detection_forward(pixel_values, prepared)
    jax.block_until_ready((logits, boxes))

    ref_logits, ref_boxes = reference_forward(pixel_values, params)
    np.testing.assert_allclose(np.asarray(logits), np.asarray(ref_logits),
                               rtol=1e-4, atol=1e-4)
    np.testing.assert_allclose(np.asarray(boxes), np.asarray(ref_boxes),
                               rtol=1e-4, atol=1e-4)
    assert logits.shape == (B, NQ, NCLS) and boxes.shape == (B, NQ, NBOX)
    print("KERNEL_OK")
</pallas_src>

<mosaic_0001>
module attributes {stable_mosaic.version = 11 : i64} {
  func.func @detr_kernel(%arg0: memref<512x8xf32, #tpu.memory_space<vmem>>, %arg1: memref<8x128xf32, #tpu.memory_space<vmem>>, %arg2: memref<1x128xf32, #tpu.memory_space<vmem>>, %arg3: memref<16x128xf32, #tpu.memory_space<vmem>>, %arg4: memref<32x128xf32, #tpu.memory_space<vmem>>, %arg5: memref<128x256xf32, #tpu.memory_space<vmem>>, %arg6: memref<128x128xf32, #tpu.memory_space<vmem>>, %arg7: memref<128x128xf32, #tpu.memory_space<vmem>>, %arg8: memref<1x128xf32, #tpu.memory_space<vmem>>, %arg9: memref<128x128xf32, #tpu.memory_space<vmem>>, %arg10: memref<128x128xf32, #tpu.memory_space<vmem>>, %arg11: memref<1x128xf32, #tpu.memory_space<vmem>>, %arg12: memref<32x128xf32, #tpu.memory_space<vmem>>) attributes {dimension_semantics = [], scalar_prefetch = 0 : i64, scratch_operands = 0 : i64, tpu.core_type = #tpu.core_type<tc>} {
    %c0 = arith.constant 0 : index
    %c0_0 = arith.constant 0 : index
    %0 = vector.load %arg0[%c0, %c0_0] : memref<512x8xf32, #tpu.memory_space<vmem>>, vector<512x8xf32>
    %c0_1 = arith.constant 0 : index
    %c0_2 = arith.constant 0 : index
    %1 = vector.load %arg1[%c0_1, %c0_2] : memref<8x128xf32, #tpu.memory_space<vmem>>, vector<8x128xf32>
    %cst = arith.constant dense<0.000000e+00> : vector<512x128xf32>
    %2 = tpu.matmul %0, %1, %cst {dimension_numbers = #tpu.dot_dimension_numbers<[1], [0], [0], [1], [0, 0, 1, 1], [], []>} : vector<512x8xf32>, vector<8x128xf32>, vector<512x128xf32> -> vector<512x128xf32>
    %c0_3 = arith.constant 0 : index
    %c0_4 = arith.constant 0 : index
    %3 = vector.load %arg2[%c0_3, %c0_4] : memref<1x128xf32, #tpu.memory_space<vmem>>, vector<1x128xf32>
    %4 = vector.broadcast %3 : vector<1x128xf32> to vector<512x128xf32>
    %5 = arith.addf %2, %4 : vector<512x128xf32>
    %c0_5 = arith.constant 0 : index
    %c0_6 = arith.constant 0 : index
    %6 = vector.load %arg5[%c0_5, %c0_6] : memref<128x256xf32, #tpu.memory_space<vmem>>, vector<128x256xf32>
    %cst_7 = arith.constant dense<0.000000e+00> : vector<512x256xf32>
    %7 = tpu.matmul %5, %6, %cst_7 {dimension_numbers = #tpu.dot_dimension_numbers<[1], [0], [0], [1], [0, 0, 1, 1], [], []>} : vector<512x128xf32>, vector<128x256xf32>, vector<512x256xf32> -> vector<512x256xf32>
    %8 = vector.extract_strided_slice %7 {offsets = [0, 0], sizes = [512, 128], strides = [1, 1]} : vector<512x256xf32> to vector<512x128xf32>
    %9 = vector.extract_strided_slice %7 {offsets = [0, 128], sizes = [512, 128], strides = [1, 1]} : vector<512x256xf32> to vector<512x128xf32>
    %c0_8 = arith.constant 0 : index
    %c0_9 = arith.constant 0 : index
    %10 = vector.load %arg3[%c0_8, %c0_9] : memref<16x128xf32, #tpu.memory_space<vmem>>, vector<16x128xf32>
    %cst_10 = arith.constant dense<0.000000e+00> : vector<16x512xf32>
    %11 = tpu.matmul %10, %8, %cst_10 {dimension_numbers = #tpu.dot_dimension_numbers<[1], [1], [0], [0], [0, 0, 1, 0], [], []>} : vector<16x128xf32>, vector<512x128xf32>, vector<16x512xf32> -> vector<16x512xf32>
    %12 = vector.extract_strided_slice %11 {offsets = [0, 0], sizes = [16, 256], strides = [1, 1]} : vector<16x512xf32> to vector<16x256xf32>
    %cst_11 = arith.constant dense<0xFF800000> : vector<16xf32>
    %13 = vector.multi_reduction <maximumf>, %12, %cst_11 [1] : vector<16x256xf32> to vector<16xf32>
    %14 = vector.shape_cast %13 : vector<16xf32> to vector<16x1xf32>
    %15 = vector.broadcast %14 : vector<16x1xf32> to vector<16x256xf32>
    %16 = arith.subf %12, %15 : vector<16x256xf32>
    %17 = math.exp %16 : vector<16x256xf32>
    %cst_12 = arith.constant dense<0.000000e+00> : vector<16xf32>
    %18 = vector.multi_reduction <add>, %17, %cst_12 [1] : vector<16x256xf32> to vector<16xf32>
    %19 = vector.shape_cast %18 : vector<16xf32> to vector<16x1xf32>
    %20 = tpu.reciprocal %19 : vector<16x1xf32> -> vector<16x1xf32>
    %21 = vector.broadcast %20 : vector<16x1xf32> to vector<16x256xf32>
    %22 = arith.mulf %17, %21 : vector<16x256xf32>
    %23 = vector.extract_strided_slice %9 {offsets = [0, 0], sizes = [256, 128], strides = [1, 1]} : vector<512x128xf32> to vector<256x128xf32>
    %cst_13 = arith.constant dense<0.000000e+00> : vector<16x128xf32>
    %24 = tpu.matmul %22, %23, %cst_13 {dimension_numbers = #tpu.dot_dimension_numbers<[1], [0], [0], [1], [0, 0, 1, 1], [], []>} : vector<16x256xf32>, vector<256x128xf32>, vector<16x128xf32> -> vector<16x128xf32>
    %25 = vector.extract_strided_slice %11 {offsets = [0, 256], sizes = [16, 256], strides = [1, 1]} : vector<16x512xf32> to vector<16x256xf32>
    %cst_14 = arith.constant dense<0xFF800000> : vector<16xf32>
    %26 = vector.multi_reduction <maximumf>, %25, %cst_14 [1] : vector<16x256xf32> to vector<16xf32>
    %27 = vector.shape_cast %26 : vector<16xf32> to vector<16x1xf32>
    %28 = vector.broadcast %27 : vector<16x1xf32> to vector<16x256xf32>
    %29 = arith.subf %25, %28 : vector<16x256xf32>
    %30 = math.exp %29 : vector<16x256xf32>
    %cst_15 = arith.constant dense<0.000000e+00> : vector<16xf32>
    %31 = vector.multi_reduction <add>, %30, %cst_15 [1] : vector<16x256xf32> to vector<16xf32>
    %32 = vector.shape_cast %31 : vector<16xf32> to vector<16x1xf32>
    %33 = tpu.reciprocal %32 : vector<16x1xf32> -> vector<16x1xf32>
    %34 = vector.broadcast %33 : vector<16x1xf32> to vector<16x256xf32>
    %35 = arith.mulf %30, %34 : vector<16x256xf32>
    %36 = vector.extract_strided_slice %9 {offsets = [256, 0], sizes = [256, 128], strides = [1, 1]} : vector<512x128xf32> to vector<256x128xf32>
    %cst_16 = arith.constant dense<0.000000e+00> : vector<16x128xf32>
    %37 = tpu.matmul %35, %36, %cst_16 {dimension_numbers = #tpu.dot_dimension_numbers<[1], [0], [0], [1], [0, 0, 1, 1], [], []>} : vector<16x256xf32>, vector<256x128xf32>, vector<16x128xf32> -> vector<16x128xf32>
    %38 = tpu.concatenate %24, %37 in 0 : vector<16x128xf32>, vector<16x128xf32> -> vector<32x128xf32>
    %c0_17 = arith.constant 0 : index
    %c0_18 = arith.constant 0 : index
    %39 = vector.load %arg6[%c0_17, %c0_18] : memref<128x128xf32, #tpu.memory_space<vmem>>, vector<128x128xf32>
    %cst_19 = arith.constant dense<0.000000e+00> : vector<32x128xf32>
    %40 = tpu.matmul %38, %39, %cst_19 {dimension_numbers = #tpu.dot_dimension_numbers<[1], [0], [0], [1], [0, 0, 1, 1], [], []>} : vector<32x128xf32>, vector<128x128xf32>, vector<32x128xf32> -> vector<32x128xf32>
    %c0_20 = arith.constant 0 : index
    %c0_21 = arith.constant 0 : index
    %41 = vector.load %arg4[%c0_20, %c0_21] : memref<32x128xf32, #tpu.memory_space<vmem>>, vector<32x128xf32>
    %42 = arith.addf %40, %41 : vector<32x128xf32>
    %c0_22 = arith.constant 0 : index
    %c0_23 = arith.constant 0 : index
    %43 = vector.load %arg7[%c0_22, %c0_23] : memref<128x128xf32, #tpu.memory_space<vmem>>, vector<128x128xf32>
    %cst_24 = arith.constant dense<0.000000e+00> : vector<32x128xf32>
    %44 = tpu.matmul %42, %43, %cst_24 {dimension_numbers = #tpu.dot_dimension_numbers<[1], [0], [0], [1], [0, 0, 1, 1], [], []>} : vector<32x128xf32>, vector<128x128xf32>, vector<32x128xf32> -> vector<32x128xf32>
    %c0_25 = arith.constant 0 : index
    %c0_26 = arith.constant 0 : index
    %45 = vector.load %arg8[%c0_25, %c0_26] : memref<1x128xf32, #tpu.memory_space<vmem>>, vector<1x128xf32>
    %46 = vector.broadcast %45 : vector<1x128xf32> to vector<32x128xf32>
    %47 = arith.addf %44, %46 : vector<32x128xf32>
    %cst_27 = arith.constant 0.000000e+00 : f32
    %48 = vector.broadcast %cst_27 : f32 to vector<32x128xf32>
    %49 = arith.maximumf %47, %48 : vector<32x128xf32>
    %c0_28 = arith.constant 0 : index
    %c0_29 = arith.constant 0 : index
    %50 = vector.load %arg9[%c0_28, %c0_29] : memref<128x128xf32, #tpu.memory_space<vmem>>, vector<128x128xf32>
    %cst_30 = arith.constant dense<0.000000e+00> : vector<32x128xf32>
    %51 = tpu.matmul %42, %50, %cst_30 {dimension_numbers = #tpu.dot_dimension_numbers<[1], [0], [0], [1], [0, 0, 1, 1], [], []>} : vector<32x128xf32>, vector<128x128xf32>, vector<32x128xf32> -> vector<32x128xf32>
    %c0_31 = arith.constant 0 : index
    %c0_32 = arith.constant 0 : index
    %52 = vector.load %arg10[%c0_31, %c0_32] : memref<128x128xf32, #tpu.memory_space<vmem>>, vector<128x128xf32>
    %cst_33 = arith.constant dense<0.000000e+00> : vector<32x128xf32>
    %53 = tpu.matmul %49, %52, %cst_33 {dimension_numbers = #tpu.dot_dimension_numbers<[1], [0], [0], [1], [0, 0, 1, 1], [], []>} : vector<32x128xf32>, vector<128x128xf32>, vector<32x128xf32> -> vector<32x128xf32>
    %54 = arith.addf %51, %53 : vector<32x128xf32>
    %c0_34 = arith.constant 0 : index
    %c0_35 = arith.constant 0 : index
    %55 = vector.load %arg11[%c0_34, %c0_35] : memref<1x128xf32, #tpu.memory_space<vmem>>, vector<1x128xf32>
    %56 = vector.broadcast %55 : vector<1x128xf32> to vector<32x128xf32>
    %57 = arith.addf %54, %56 : vector<32x128xf32>
    %58 = tpu.iota {dimensions = array<i32: 1>} : vector<32x128xi32>
    %c9_i32 = arith.constant 9 : i32
    %59 = vector.broadcast %c9_i32 : i32 to vector<32x128xi32>
    %60 = arith.cmpi sge, %58, %59 : vector<32x128xi32>
    %c13_i32 = arith.constant 13 : i32
    %61 = vector.broadcast %c13_i32 : i32 to vector<32x128xi32>
    %62 = arith.cmpi slt, %58, %61 : vector<32x128xi32>
    %63 = arith.andi %60, %62 : vector<32x128xi1>
    %64 = arith.negf %57 : vector<32x128xf32>
    %65 = math.exp %64 : vector<32x128xf32>
    %cst_36 = arith.constant 1.000000e+00 : f32
    %66 = vector.broadcast %cst_36 : f32 to vector<32x128xf32>
    %67 = arith.addf %66, %65 : vector<32x128xf32>
    %68 = arith.divf %66, %67 : vector<32x128xf32>
    %69 = arith.select %63, %68, %57 : vector<32x128xi1>, vector<32x128xf32>
    %c0_37 = arith.constant 0 : index
    %c0_38 = arith.constant 0 : index
    %70 = vector.load %arg12[%c0_37, %c0_38] : memref<32x128xf32, #tpu.memory_space<vmem>>, vector<32x128xf32>
    tpu.vector_store %arg12[%c0_37, %c0_38], %69 {strides = array<i32>} : memref<32x128xf32, #tpu.memory_space<vmem>>, vector<32x128xf32>,
    return
  }
}

</mosaic_0001>

<llo_original>
// kernel: object_detection_forward.1
$region0: #{object_detection_forward.1}
  #allocation0 [shape = 'u32[]', space=smem, size = 0x4, offset = 0x4, fixed_abs, tag = 'smem constant byte address 0x4 - core index']
  #allocation1 [shape = 'u32[144,128]{1,0:T(1,128)}', space=vmem, size = 0x12000, scoped, tag = 'internal scratch']
  %s0 = inlined_call_operand.vmem [shape: f32[512,8], index: 0, kind: input, shape index: {}]
  %s1 = inlined_call_operand.vmem [shape: f32[8,128], index: 1, kind: input, shape index: {}]
  %s2 = inlined_call_operand.vmem [shape: f32[1,128], index: 2, kind: input, shape index: {}]
  %s3 = inlined_call_operand.vmem [shape: f32[16,128], index: 3, kind: input, shape index: {}]
  %s4 = inlined_call_operand.vmem [shape: f32[32,128], index: 4, kind: input, shape index: {}]
  %s5 = inlined_call_operand.vmem [shape: f32[128,256], index: 5, kind: input, shape index: {}]
  %s6 = inlined_call_operand.vmem [shape: f32[128,128], index: 6, kind: input, shape index: {}]
  %s7 = inlined_call_operand.vmem [shape: f32[128,128], index: 7, kind: input, shape index: {}]
  %s8 = inlined_call_operand.vmem [shape: f32[1,128], index: 8, kind: input, shape index: {}]
  %s9 = inlined_call_operand.vmem [shape: f32[128,128], index: 9, kind: input, shape index: {}]
  %s10 = inlined_call_operand.vmem [shape: f32[128,128], index: 10, kind: input, shape index: {}]
  %s11 = inlined_call_operand.vmem [shape: f32[1,128], index: 11, kind: input, shape index: {}]
  %s12 = inlined_call_operand.vmem [shape: f32[32,128], index: 12, kind: output, shape index: {}]
  %s13 = sld [smem:[#allocation0]]
  $region58: #{object_detection_forward.1} parent=0
    _
  %s15 = ssub.s32 1, %s13
  %s16 = scalar_select 0, %s15, %s13
  // Predicated region
  $region2: #{object_detection_forward.1} parent=0 // pred_check
    _
  $region3: #{object_detection_forward.1} parent=0 // pred_check_branch
    %18 = sbr.rel (0) target = $region5
  $region4: #{object_detection_forward.1} parent=0 // pred_region
    _
  $region5: #{object_detection_forward.1} parent=0 // pred_fallthru
    _
  // Predicated region
  $region6: #{object_detection_forward.1} parent=0 // pred_check
    _
  $region7: #{object_detection_forward.1} parent=0 // pred_check_branch
    %20 = sbr.rel (0) target = $region9
  $region8: #{object_detection_forward.1} parent=0 // pred_region
    _
  $region9: #{object_detection_forward.1} parent=0 // pred_fallthru
    _
  // Predicated region
  $region10: #{object_detection_forward.1} parent=0 // pred_check
    _
  $region11: #{object_detection_forward.1} parent=0 // pred_check_branch
    %22 = sbr.rel (0) target = $region13
  $region12: #{object_detection_forward.1} parent=0 // pred_region
    _
  $region13: #{object_detection_forward.1} parent=0 // pred_fallthru
    _
  // Predicated region
  $region14: #{object_detection_forward.1} parent=0 // pred_check
    _
  $region15: #{object_detection_forward.1} parent=0 // pred_check_branch
    %24 = sbr.rel (0) target = $region17
  $region16: #{object_detection_forward.1} parent=0 // pred_region
    _
  $region17: #{object_detection_forward.1} parent=0 // pred_fallthru
    _
  // Predicated region
  $region18: #{object_detection_forward.1} parent=0 // pred_check
    _
  $region19: #{object_detection_forward.1} parent=0 // pred_check_branch
    %26 = sbr.rel (0) target = $region21
  $region20: #{object_detection_forward.1} parent=0 // pred_region
    _
  $region21: #{object_detection_forward.1} parent=0 // pred_fallthru
    _
  // Predicated region
  $region22: #{object_detection_forward.1} parent=0 // pred_check
    _
  $region23: #{object_detection_forward.1} parent=0 // pred_check_branch
    %28 = sbr.rel (0) target = $region25
  $region24: #{object_detection_forward.1} parent=0 // pred_region
    _
  $region25: #{object_detection_forward.1} parent=0 // pred_fallthru
    _
  // Predicated region
  $region26: #{object_detection_forward.1} parent=0 // pred_check
    _
  $region27: #{object_detection_forward.1} parent=0 // pred_check_branch
    %30 = sbr.rel (0) target = $region29
  $region28: #{object_detection_forward.1} parent=0 // pred_region
    _
  $region29: #{object_detection_forward.1} parent=0 // pred_fallthru
    _
  // Predicated region
  $region30: #{object_detection_forward.1} parent=0 // pred_check
    _
  $region31: #{object_detection_forward.1} parent=0 // pred_check_branch
    %32 = sbr.rel (0) target = $region33
  $region32: #{object_detection_forward.1} parent=0 // pred_region
    _
  $region33: #{object_detection_forward.1} parent=0 // pred_fallthru
    _
  // Predicated region
  $region34: #{object_detection_forward.1} parent=0 // pred_check
    _
  $region35: #{object_detection_forward.1} parent=0 // pred_check_branch
    %34 = sbr.rel (0) target = $region37
  $region36: #{object_detection_forward.1} parent=0 // pred_region
    _
  $region37: #{object_detection_forward.1} parent=0 // pred_fallthru
    _
  // Predicated region
  $region38: #{object_detection_forward.1} parent=0 // pred_check
    _
  $region39: #{object_detection_forward.1} parent=0 // pred_check_branch
    %36 = sbr.rel (0) target = $region41
  $region40: #{object_detection_forward.1} parent=0 // pred_region
    _
  $region41: #{object_detection_forward.1} parent=0 // pred_fallthru
    _
  // Predicated region
  $region42: #{object_detection_forward.1} parent=0 // pred_check
    _
  $region43: #{object_detection_forward.1} parent=0 // pred_check_branch
    %38 = sbr.rel (0) target = $region45
  $region44: #{object_detection_forward.1} parent=0 // pred_region
    _
  $region45: #{object_detection_forward.1} parent=0 // pred_fallthru
    _
  // Predicated region
  $region46: #{object_detection_forward.1} parent=0 // pred_check
    _
  $region47: #{object_detection_forward.1} parent=0 // pred_check_branch
    %40 = sbr.rel (0) target = $region49
  $region48: #{object_detection_forward.1} parent=0 // pred_region
    _
  $region49: #{object_detection_forward.1} parent=0 // pred_fallthru
    _
  %v41 = vld [vmem:[%s0] sm:$0xff]
  %v42 = vld [vmem:[%s0 + $0x8] sm:$0xff]
  %v43 = vld [vmem:[%s0 + $0x10] sm:$0xff]
  %v44 = vld [vmem:[%s0 + $0x18] sm:$0xff]
  %v45 = vld [vmem:[%s0 + $0x20] sm:$0xff]
  %v46 = vld [vmem:[%s0 + $0x28] sm:$0xff]
  %v47 = vld [vmem:[%s0 + $0x30] sm:$0xff]
  %v48 = vld [vmem:[%s0 + $0x38] sm:$0xff]
  %v49 = vld [vmem:[%s0 + $0x40] sm:$0xff]
  %v50 = vld [vmem:[%s0 + $0x48] sm:$0xff]
  %v51 = vld [vmem:[%s0 + $0x50] sm:$0xff]
  %v52 = vld [vmem:[%s0 + $0x58] sm:$0xff]
  %v53 = vld [vmem:[%s0 + $0x60] sm:$0xff]
  %v54 = vld [vmem:[%s0 + $0x68] sm:$0xff]
  %v55 = vld [vmem:[%s0 + $0x70] sm:$0xff]
  %v56 = vld [vmem:[%s0 + $0x78] sm:$0xff]
  %v57 = vld [vmem:[%s0 + $0x80] sm:$0xff]
  %v58 = vld [vmem:[%s0 + $0x88] sm:$0xff]
  %v59 = vld [vmem:[%s0 + $0x90] sm:$0xff]
  %v60 = vld [vmem:[%s0 + $0x98] sm:$0xff]
  %v61 = vld [vmem:[%s0 + $0xa0] sm:$0xff]
  %v62 = vld [vmem:[%s0 + $0xa8] sm:$0xff]
  %v63 = vld [vmem:[%s0 + $0xb0] sm:$0xff]
  %v64 = vld [vmem:[%s0 + $0xb8] sm:$0xff]
  %v65 = vld [vmem:[%s0 + $0xc0] sm:$0xff]
  %v66 = vld [vmem:[%s0 + $0xc8] sm:$0xff]
  %v67 = vld [vmem:[%s0 + $0xd0] sm:$0xff]
  %v68 = vld [vmem:[%s0 + $0xd8] sm:$0xff]
  %v69 = vld [vmem:[%s0 + $0xe0] sm:$0xff]
  %v70 = vld [vmem:[%s0 + $0xe8] sm:$0xff]
  %v71 = vld [vmem:[%s0 + $0xf0] sm:$0xff]
  %v72 = vld [vmem:[%s0 + $0xf8] sm:$0xff]
  %v73 = vld [vmem:[%s0 + $0x100] sm:$0xff]
  %v74 = vld [vmem:[%s0 + $0x108] sm:$0xff]
  %v75 = vld [vmem:[%s0 + $0x110] sm:$0xff]
  %v76 = vld [vmem:[%s0 + $0x118] sm:$0xff]
  %v77 = vld [vmem:[%s0 + $0x120] sm:$0xff]
  %v78 = vld [vmem:[%s0 + $0x128] sm:$0xff]
  %v79 = vld [vmem:[%s0 + $0x130] sm:$0xff]
  %v80 = vld [vmem:[%s0 + $0x138] sm:$0xff]
  %v81 = vld [vmem:[%s0 + $0x140] sm:$0xff]
  %v82 = vld [vmem:[%s0 + $0x148] sm:$0xff]
  %v83 = vld [vmem:[%s0 + $0x150] sm:$0xff]
  %v84 = vld [vmem:[%s0 + $0x158] sm:$0xff]
  %v85 = vld [vmem:[%s0 + $0x160] sm:$0xff]
  %v86 = vld [vmem:[%s0 + $0x168] sm:$0xff]
  %v87 = vld [vmem:[%s0 + $0x170] sm:$0xff]
  %v88 = vld [vmem:[%s0 + $0x178] sm:$0xff]
  %v89 = vld [vmem:[%s0 + $0x180] sm:$0xff]
  %v90 = vld [vmem:[%s0 + $0x188] sm:$0xff]
  %v91 = vld [vmem:[%s0 + $0x190] sm:$0xff]
  %v92 = vld [vmem:[%s0 + $0x198] sm:$0xff]
  %v93 = vld [vmem:[%s0 + $0x1a0] sm:$0xff]
  %v94 = vld [vmem:[%s0 + $0x1a8] sm:$0xff]
  %v95 = vld [vmem:[%s0 + $0x1b0] sm:$0xff]
  %v96 = vld [vmem:[%s0 + $0x1b8] sm:$0xff]
  %v97 = vld [vmem:[%s0 + $0x1c0] sm:$0xff]
  %v98 = vld [vmem:[%s0 + $0x1c8] sm:$0xff]
  %v99 = vld [vmem:[%s0 + $0x1d0] sm:$0xff]
  %v100 = vld [vmem:[%s0 + $0x1d8] sm:$0xff]
  %v101 = vld [vmem:[%s0 + $0x1e0] sm:$0xff]
  %v102 = vld [vmem:[%s0 + $0x1e8] sm:$0xff]
  %v103 = vld [vmem:[%s0 + $0x1f0] sm:$0xff]
  %v104 = vld [vmem:[%s0 + $0x1f8] sm:$0xff]
  %v105 = vld [vmem:[%s1] sm:$0xff]
  %v106 = vld [vmem:[%s2] sm:$0x1]
  %v108 = vlaneseq
  %v109 = vshrl.u32 %v108, 7
  %v110 = vsub.s32 0, %v109
  %v111 = vrot.slane %v106, %v110
  %vm113 = vcmask 64512
  %v115 = vsel %vm113, %v41, 0
  %v118 = vsel %vm113, %v42, 0
  %v121 = vsel %vm113, %v43, 0
  %v124 = vsel %vm113, %v44, 0
  %v127 = vsel %vm113, %v45, 0
  %v130 = vsel %vm113, %v46, 0
  %v133 = vsel %vm113, %v47, 0
  %v136 = vsel %vm113, %v48, 0
  %v139 = vsel %vm113, %v49, 0
  %v142 = vsel %vm113, %v50, 0
  %v145 = vsel %vm113, %v51, 0
  %v148 = vsel %vm113, %v52, 0
  %v151 = vsel %vm113, %v53, 0
  %v154 = vsel %vm113, %v54, 0
  %v157 = vsel %vm113, %v55, 0
  %v160 = vsel %vm113, %v56, 0
  %v163 = vsel %vm113, %v57, 0
  %v166 = vsel %vm113, %v58, 0
  %v169 = vsel %vm113, %v59, 0
  %v172 = vsel %vm113, %v60, 0
  %v175 = vsel %vm113, %v61, 0
  %v178 = vsel %vm113, %v62, 0
  %v181 = vsel %vm113, %v63, 0
  %v184 = vsel %vm113, %v64, 0
  %v187 = vsel %vm113, %v65, 0
  %v190 = vsel %vm113, %v66, 0
  %v193 = vsel %vm113, %v67, 0
  %v196 = vsel %vm113, %v68, 0
  %v199 = vsel %vm113, %v69, 0
  %v202 = vsel %vm113, %v70, 0
  %v205 = vsel %vm113, %v71, 0
  %v208 = vsel %vm113, %v72, 0
  %v211 = vsel %vm113, %v73, 0
  %v214 = vsel %vm113, %v74, 0
  %v217 = vsel %vm113, %v75, 0
  %v220 = vsel %vm113, %v76, 0
  %v223 = vsel %vm113, %v77, 0
  %v226 = vsel %vm113, %v78, 0
  %v229 = vsel %vm113, %v79, 0
  %v232 = vsel %vm113, %v80, 0
  %v235 = vsel %vm113, %v81, 0
  %v238 = vsel %vm113, %v82, 0
  %v241 = vsel %vm113, %v83, 0
  %v244 = vsel %vm113, %v84, 0
  %v247 = vsel %vm113, %v85, 0
  %v250 = vsel %vm113, %v86, 0
  %v253 = vsel %vm113, %v87, 0
  %v256 = vsel %vm113, %v88, 0
  %v259 = vsel %vm113, %v89, 0
  %v262 = vsel %vm113, %v90, 0
  %v265 = vsel %vm113, %v91, 0
  %v268 = vsel %vm113, %v92, 0
  %v271 = vsel %vm113, %v93, 0
  %v274 = vsel %vm113, %v94, 0
  %v277 = vsel %vm113, %v95, 0
  %v280 = vsel %vm113, %v96, 0
  %v283 = vsel %vm113, %v97, 0
  %v286 = vsel %vm113, %v98, 0
  %v289 = vsel %vm113, %v99, 0
  %v292 = vsel %vm113, %v100, 0
  %v295 = vsel %vm113, %v101, 0
  %v298 = vsel %vm113, %v102, 0
  %v301 = vsel %vm113, %v103, 0
  %v304 = vsel %vm113, %v104, 0
  %306 = vmatprep.subr.mxu0 0.0
  %307 = vmatpush1.msra.mxu0 %v105
  %308 = vmatprep.subr.mxu0 0.0
  %309 = vmatpush1.msra.mxu0 0.0
  %310 = vmatprep.subr.mxu0 0.0
  %311 = vmatpush1.msra.mxu0 0.0
  %312 = vmatprep.subr.mxu0 0.0
  %313 = vmatpush1.msra.mxu0 0.0
  %314 = vmatprep.subr.mxu0 0.0
  %315 = vmatpush1.msra.mxu0 0.0
  %316 = vmatprep.subr.mxu0 0.0
  %317 = vmatpush1.msra.mxu0 0.0
  %318 = vmatprep.subr.mxu0 0.0
  %319 = vmatpush1.msra.mxu0 0.0
  %320 = vmatprep.subr.mxu0 0.0
  %321 = vmatpush1.msra.mxu0 0.0
  %322 = vmatprep.subr.mxu0 0.0
  %323 = vmatpush1.msra.mxu0 0.0
  %324 = vmatprep.subr.mxu0 0.0
  %325 = vmatpush1.msra.mxu0 0.0
  %326 = vmatprep.subr.mxu0 0.0
  %327 = vmatpush1.msra.mxu0 0.0
  %328 = vmatprep.subr.mxu0 0.0
  %329 = vmatpush1.msra.mxu0 0.0
  %330 = vmatprep.subr.mxu0 0.0
  %331 = vmatpush1.msra.mxu0 0.0
  %332 = vmatprep.subr.mxu0 0.0
  %333 = vmatpush1.msra.mxu0 0.0
  %334 = vmatprep.subr.mxu0 0.0
  %335 = vmatpush1.msra.mxu0 0.0
  %336 = vmatprep.subr.mxu0 0.0
  %337 = vmatpush1.msra.mxu0 0.0
  %338 = vmatprep.subr.mxu0 0.0
  %339 = vmatpush1.msra.mxu0 0.0
  %340 = vmatprep.subr.mxu0 0.0
  %341 = vmatpush1.msra.mxu0 0.0
  %342 = vmatprep.subr.mxu0 0.0
  %343 = vmatpush1.msra.mxu0 0.0
  %344 = vmatprep.subr.mxu0 0.0
  %345 = vmatpush1.msra.mxu0 0.0
  %346 = vmatprep.subr.mxu0 0.0
  %347 = vmatpush1.msra.mxu0 0.0
  %348 = vmatprep.subr.mxu0 0.0
  %349 = vmatpush1.msra.mxu0 0.0
  %350 = vmatprep.subr.mxu0 0.0
  %351 = vmatpush1.msra.mxu0 0.0
  %352 = vmatprep.subr.mxu0 0.0
  %353 = vmatpush1.msra.mxu0 0.0
  %354 = vmatprep.subr.mxu0 0.0
  %355 = vmatpush1.msra.mxu0 0.0
  %356 = vmatprep.subr.mxu0 0.0
  %357 = vmatpush1.msra.mxu0 0.0
  %358 = vmatprep.subr.mxu0 0.0
  %359 = vmatpush1.msra.mxu0 0.0
  %360 = vmatprep.subr.mxu0 0.0
  %361 = vmatpush1.msra.mxu0 0.0
  %362 = vmatprep.subr.mxu0 0.0
  %363 = vmatpush1.msra.mxu0 0.0
  %364 = vmatprep.subr.mxu0 0.0
  %365 = vmatpush1.msra.mxu0 0.0
  %366 = vmatprep.subr.mxu0 0.0
  %367 = vmatpush1.msra.mxu0 0.0
  %368 = vmatprep.subr.mxu0 0.0
  %369 = vmatpush1.msra.mxu0 0.0
  %370 = vmatprep.mubr.f32.mxu0 0.0
  %371 = vmatmul.mubr.f32.gmra.mrb[0].mxu0 %v115
  %v372 = vpop.f32.mrb[0].mxu0
  %v373 = vadd.f32 %v111, %v372
  %v374 = vpop.f32.mrb[0].mxu0
  %375 = vmatprep.mubr.f32.mxu0 0.0
  %376 = vmatmul.mubr.f32.gmra.mrb[0].mxu0 %v118
  %v377 = vpop.f32.mrb[0].mxu0
  %v378 = vadd.f32 %v111, %v377
  %v379 = vpop.f32.mrb[0].mxu0
  %380 = vmatprep.mubr.f32.mxu0 0.0
  %381 = vmatmul.mubr.f32.gmra.mrb[0].mxu0 %v121
  %v382 = vpop.f32.mrb[0].mxu0
  %v383 = vadd.f32 %v111, %v382
  %v384 = vpop.f32.mrb[0].mxu0
  %385 = vmatprep.mubr.f32.mxu0 0.0
  %386 = vmatmul.mubr.f32.gmra.mrb[0].mxu0 %v124
  %v387 = vpop.f32.mrb[0].mxu0
  %v388 = vadd.f32 %v111, %v387
  %v389 = vpop.f32.mrb[0].mxu0
  %390 = vmatprep.mubr.f32.mxu0 0.0
  %391 = vmatmul.mubr.f32.gmra.mrb[0].mxu0 %v127
  %v392 = vpop.f32.mrb[0].mxu0
  %v393 = vadd.f32 %v111, %v392
  %v394 = vpop.f32.mrb[0].mxu0
  %395 = vmatprep.mubr.f32.mxu0 0.0
  %396 = vmatmul.mubr.f32.gmra.mrb[0].mxu0 %v130
  %v397 = vpop.f32.mrb[0].mxu0
  %v398 = vadd.f32 %v111, %v397
  %v399 = vpop.f32.mrb[0].mxu0
  %400 = vmatprep.mubr.f32.mxu0 0.0
  %401 = vmatmul.mubr.f32.gmra.mrb[0].mxu0 %v133
  %v402 = vpop.f32.mrb[0].mxu0
  %v403 = vadd.f32 %v111, %v402
  %v404 = vpop.f32.mrb[0].mxu0
  %405 = vmatprep.mubr.f32.mxu0 0.0
  %406 = vmatmul.mubr.f32.gmra.mrb[0].mxu0 %v136
  %v407 = vpop.f32.mrb[0].mxu0
  %v408 = vadd.f32 %v111, %v407
  %v409 = vpop.f32.mrb[0].mxu0
  %410 = vmatprep.mubr.f32.mxu0 0.0
  %411 = vmatmul.mubr.f32.gmra.mrb[0].mxu0 %v139
  %v412 = vpop.f32.mrb[0].mxu0
  %v413 = vadd.f32 %v111, %v412
  %v414 = vpop.f32.mrb[0].mxu0
  %415 = vmatprep.mubr.f32.mxu0 0.0
  %416 = vmatmul.mubr.f32.gmra.mrb[0].mxu0 %v142
  %v417 = vpop.f32.mrb[0].mxu0
  %v418 = vadd.f32 %v111, %v417
  %v419 = vpop.f32.mrb[0].mxu0
  %420 = vmatprep.mubr.f32.mxu0 0.0
  %421 = vmatmul.mubr.f32.gmra.mrb[0].mxu0 %v145
  %v422 = vpop.f32.mrb[0].mxu0
  %v423 = vadd.f32 %v111, %v422
  %v424 = vpop.f32.mrb[0].mxu0
  %425 = vmatprep.mubr.f32.mxu0 0.0
  %426 = vmatmul.mubr.f32.gmra.mrb[0].mxu0 %v148
  %v427 = vpop.f32.mrb[0].mxu0
  %v428 = vadd.f32 %v111, %v427
  %v429 = vpop.f32.mrb[0].mxu0
  %430 = vmatprep.mubr.f32.mxu0 0.0
  %431 = vmatmul.mubr.f32.gmra.mrb[0].mxu0 %v151
  %v432 = vpop.f32.mrb[0].mxu0
  %v433 = vadd.f32 %v111, %v432
  %v434 = vpop.f32.mrb[0].mxu0
  %435 = vmatprep.mubr.f32.mxu0 0.0
  %436 = vmatmul.mubr.f32.gmra.mrb[0].mxu0 %v154
  %v437 = vpop.f32.mrb[0].mxu0
  %v438 = vadd.f32 %v111, %v437
  %v439 = vpop.f32.mrb[0].mxu0
  %440 = vmatprep.mubr.f32.mxu0 0.0
  %441 = vmatmul.mubr.f32.gmra.mrb[0].mxu0 %v157
  %v442 = vpop.f32.mrb[0].mxu0
  %v443 = vadd.f32 %v111, %v442
  %v444 = vpop.f32.mrb[0].mxu0
  %445 = vmatprep.mubr.f32.mxu0 0.0
  %446 = vmatmul.mubr.f32.gmra.mrb[0].mxu0 %v160
  %v447 = vpop.f32.mrb[0].mxu0
  %v448 = vadd.f32 %v111, %v447
  %v449 = vpop.f32.mrb[0].mxu0
  %450 = vmatprep.mubr.f32.mxu0 0.0
  %451 = vmatmul.mubr.f32.gmra.mrb[0].mxu0 %v163
  %v452 = vpop.f32.mrb[0].mxu0
  %v453 = vadd.f32 %v111, %v452
  %v454 = vpop.f32.mrb[0].mxu0
  %455 = vmatprep.mubr.f32.mxu0 0.0
  %456 = vmatmul.mubr.f32.gmra.mrb[0].mxu0 %v166
  %v457 = vpop.f32.mrb[0].mxu0
  %v458 = vadd.f32 %v111, %v457
  %v459 = vpop.f32.mrb[0].mxu0
  %460 = vmatprep.mubr.f32.mxu0 0.0
  %461 = vmatmul.mubr.f32.gmra.mrb[0].mxu0 %v169
  %v462 = vpop.f32.mrb[0].mxu0
  %v463 = vadd.f32 %v111, %v462
  %v464 = vpop.f32.mrb[0].mxu0
  %465 = vmatprep.mubr.f32.mxu0 0.0
  %466 = vmatmul.mubr.f32.gmra.mrb[0].mxu0 %v172
  %v467 = vpop.f32.mrb[0].mxu0
  %v468 = vadd.f32 %v111, %v467
  %v469 = vpop.f32.mrb[0].mxu0
  %470 = vmatprep.mubr.f32.mxu0 0.0
  %471 = vmatmul.mubr.f32.gmra.mrb[0].mxu0 %v175
  %v472 = vpop.f32.mrb[0].mxu0
  %v473 = vadd.f32 %v111, %v472
  %v474 = vpop.f32.mrb[0].mxu0
  %475 = vmatprep.mubr.f32.mxu0 0.0
  %476 = vmatmul.mubr.f32.gmra.mrb[0].mxu0 %v178
  %v477 = vpop.f32.mrb[0].mxu0
  %v478 = vadd.f32 %v111, %v477
  %v479 = vpop.f32.mrb[0].mxu0
  %480 = vmatprep.mubr.f32.mxu0 0.0
  %481 = vmatmul.mubr.f32.gmra.mrb[0].mxu0 %v181
  %v482 = vpop.f32.mrb[0].mxu0
  %v483 = vadd.f32 %v111, %v482
  %v484 = vpop.f32.mrb[0].mxu0
  %485 = vmatprep.mubr.f32.mxu0 0.0
  %486 = vmatmul.mubr.f32.gmra.mrb[0].mxu0 %v184
  %v487 = vpop.f32.mrb[0].mxu0
  %v488 = vadd.f32 %v111, %v487
  %v489 = vpop.f32.mrb[0].mxu0
  %490 = vmatprep.mubr.f32.mxu0 0.0
  %491 = vmatmul.mubr.f32.gmra.mrb[0].mxu0 %v187
  %v492 = vpop.f32.mrb[0].mxu0
  %v493 = vadd.f32 %v111, %v492
  %v494 = vpop.f32.mrb[0].mxu0
  %495 = vmatprep.mubr.f32.mxu0 0.0
  %496 = vmatmul.mubr.f32.gmra.mrb[0].mxu0 %v190
  %v497 = vpop.f32.mrb[0].mxu0
  %v498 = vadd.f32 %v111, %v497
  %v499 = vpop.f32.mrb[0].mxu0
  %500 = vmatprep.mubr.f32.mxu0 0.0
  %501 = vmatmul.mubr.f32.gmra.mrb[0].mxu0 %v193
  %v502 = vpop.f32.mrb[0].mxu0
  %v503 = vadd.f32 %v111, %v502
  %v504 = vpop.f32.mrb[0].mxu0
  %505 = vmatprep.mubr.f32.mxu0 0.0
  %506 = vmatmul.mubr.f32.gmra.mrb[0].mxu0 %v196
  %v507 = vpop.f32.mrb[0].mxu0
  %v508 = vadd.f32 %v111, %v507
  %v509 = vpop.f32.mrb[0].mxu0
  %510 = vmatprep.mubr.f32.mxu0 0.0
  %511 = vmatmul.mubr.f32.gmra.mrb[0].mxu0 %v199
  %v512 = vpop.f32.mrb[0].mxu0
  %v513 = vadd.f32 %v111, %v512
  %v514 = vpop.f32.mrb[0].mxu0
  %515 = vmatprep.mubr.f32.mxu0 0.0
  %516 = vmatmul.mubr.f32.gmra.mrb[0].mxu0 %v202
  %v517 = vpop.f32.mrb[0].mxu0
  %v518 = vadd.f32 %v111, %v517
  %v519 = vpop.f32.mrb[0].mxu0
  %520 = vmatprep.mubr.f32.mxu0 0.0
  %521 = vmatmul.mubr.f32.gmra.mrb[0].mxu0 %v205
  %v522 = vpop.f32.mrb[0].mxu0
  %v523 = vadd.f32 %v111, %v522
  %v524 = vpop.f32.mrb[0].mxu0
  %525 = vmatprep.mubr.f32.mxu0 0.0
  %526 = vmatmul.mubr.f32.gmra.mrb[0].mxu0 %v208
  %v527 = vpop.f32.mrb[0].mxu0
  %v528 = vadd.f32 %v111, %v527
  %v529 = vpop.f32.mrb[0].mxu0
  %530 = vmatprep.mubr.f32.mxu0 0.0
  %531 = vmatmul.mubr.f32.gmra.mrb[0].mxu0 %v211
  %v532 = vpop.f32.mrb[0].mxu0
  %v533 = vadd.f32 %v111, %v532
  %v534 = vpop.f32.mrb[0].mxu0
  %535 = vmatprep.mubr.f32.mxu0 0.0
  %536 = vmatmul.mubr.f32.gmra.mrb[0].mxu0 %v214
  %v537 = vpop.f32.mrb[0].mxu0
  %v538 = vadd.f32 %v111, %v537
  %v539 = vpop.f32.mrb[0].mxu0
  %540 = vmatprep.mubr.f32.mxu0 0.0
  %541 = vmatmul.mubr.f32.gmra.mrb[0].mxu0 %v217
  %v542 = vpop.f32.mrb[0].mxu0
  %v543 = vadd.f32 %v111, %v542
  %v544 = vpop.f32.mrb[0].mxu0
  %545 = vmatprep.mubr.f32.mxu0 0.0
  %546 = vmatmul.mubr.f32.gmra.mrb[0].mxu0 %v220
  %v547 = vpop.f32.mrb[0].mxu0
  %v548 = vadd.f32 %v111, %v547
  %v549 = vpop.f32.mrb[0].mxu0
  %550 = vmatprep.mubr.f32.mxu0 0.0
  %551 = vmatmul.mubr.f32.gmra.mrb[0].mxu0 %v223
  %v552 = vpop.f32.mrb[0].mxu0
  %v553 = vadd.f32 %v111, %v552
  %v554 = vpop.f32.mrb[0].mxu0
  %555 = vmatprep.mubr.f32.mxu0 0.0
  %556 = vmatmul.mubr.f32.gmra.mrb[0].mxu0 %v226
  %v557 = vpop.f32.mrb[0].mxu0
  %v558 = vadd.f32 %v111, %v557
  %v559 = vpop.f32.mrb[0].mxu0
  %560 = vmatprep.mubr.f32.mxu0 0.0
  %561 = vmatmul.mubr.f32.gmra.mrb[0].mxu0 %v229
  %v562 = vpop.f32.mrb[0].mxu0
  %v563 = vadd.f32 %v111, %v562
  %v564 = vpop.f32.mrb[0].mxu0
  %565 = vmatprep.mubr.f32.mxu0 0.0
  %566 = vmatmul.mubr.f32.gmra.mrb[0].mxu0 %v232
  %v567 = vpop.f32.mrb[0].mxu0
  %v568 = vadd.f32 %v111, %v567
  %v569 = vpop.f32.mrb[0].mxu0
  %570 = vmatprep.mubr.f32.mxu0 0.0
  %571 = vmatmul.mubr.f32.gmra.mrb[0].mxu0 %v235
  %v572 = vpop.f32.mrb[0].mxu0
  %v573 = vadd.f32 %v111, %v572
  %v574 = vpop.f32.mrb[0].mxu0
  %575 = vmatprep.mubr.f32.mxu0 0.0
  %576 = vmatmul.mubr.f32.gmra.mrb[0].mxu0 %v238
  %v577 = vpop.f32.mrb[0].mxu0
  %v578 = vadd.f32 %v111, %v577
  %v579 = vpop.f32.mrb[0].mxu0
  %580 = vmatprep.mubr.f32.mxu0 0.0
  %581 = vmatmul.mubr.f32.gmra.mrb[0].mxu0 %v241
  %v582 = vpop.f32.mrb[0].mxu0
  %v583 = vadd.f32 %v111, %v582
  %v584 = vpop.f32.mrb[0].mxu0
  %585 = vmatprep.mubr.f32.mxu0 0.0
  %586 = vmatmul.mubr.f32.gmra.mrb[0].mxu0 %v244
  %v587 = vpop.f32.mrb[0].mxu0
  %v588 = vadd.f32 %v111, %v587
  %v589 = vpop.f32.mrb[0].mxu0
  %590 = vmatprep.mubr.f32.mxu0 0.0
  %591 = vmatmul.mubr.f32.gmra.mrb[0].mxu0 %v247
  %v592 = vpop.f32.mrb[0].mxu0
  %v593 = vadd.f32 %v111, %v592
  %v594 = vpop.f32.mrb[0].mxu0
  %595 = vmatprep.mubr.f32.mxu0 0.0
  %596 = vmatmul.mubr.f32.gmra.mrb[0].mxu0 %v250
  %v597 = vpop.f32.mrb[0].mxu0
  %v598 = vadd.f32 %v111, %v597
  %v599 = vpop.f32.mrb[0].mxu0
  %600 = vmatprep.mubr.f32.mxu0 0.0
  %601 = vmatmul.mubr.f32.gmra.mrb[0].mxu0 %v253
  %v602 = vpop.f32.mrb[0].mxu0
  %v603 = vadd.f32 %v111, %v602
  %v604 = vpop.f32.mrb[0].mxu0
  %605 = vmatprep.mubr.f32.mxu0 0.0
  %606 = vmatmul.mubr.f32.gmra.mrb[0].mxu0 %v256
  %v607 = vpop.f32.mrb[0].mxu0
  %v608 = vadd.f32 %v111, %v607
  %v609 = vpop.f32.mrb[0].mxu0
  %610 = vmatprep.mubr.f32.mxu0 0.0
  %611 = vmatmul.mubr.f32.gmra.mrb[0].mxu0 %v259
  %v612 = vpop.f32.mrb[0].mxu0
  %v613 = vadd.f32 %v111, %v612
  %v614 = vpop.f32.mrb[0].mxu0
  %615 = vmatprep.mubr.f32.mxu0 0.0
  %616 = vmatmul.mubr.f32.gmra.mrb[0].mxu0 %v262
  %v617 = vpop.f32.mrb[0].mxu0
  %v618 = vadd.f32 %v111, %v617
  %v619 = vpop.f32.mrb[0].mxu0
  %620 = vmatprep.mubr.f32.mxu0 0.0
  %621 = vmatmul.mubr.f32.gmra.mrb[0].mxu0 %v265
  %v622 = vpop.f32.mrb[0].mxu0
  %v623 = vadd.f32 %v111, %v622
  %v624 = vpop.f32.mrb[0].mxu0
  %625 = vmatprep.mubr.f32.mxu0 0.0
  %626 = vmatmul.mubr.f32.gmra.mrb[0].mxu0 %v268
  %v627 = vpop.f32.mrb[0].mxu0
  %v628 = vadd.f32 %v111, %v627
  %v629 = vpop.f32.mrb[0].mxu0
  %630 = vmatprep.mubr.f32.mxu0 0.0
  %631 = vmatmul.mubr.f32.gmra.mrb[0].mxu0 %v271
  %v632 = vpop.f32.mrb[0].mxu0
  %v633 = vadd.f32 %v111, %v632
  %v634 = vpop.f32.mrb[0].mxu0
  %635 = vmatprep.mubr.f32.mxu0 0.0
  %636 = vmatmul.mubr.f32.gmra.mrb[0].mxu0 %v274
  %v637 = vpop.f32.mrb[0].mxu0
  %v638 = vadd.f32 %v111, %v637
  %v639 = vpop.f32.mrb[0].mxu0
  %640 = vmatprep.mubr.f32.mxu0 0.0
  %641 = vmatmul.mubr.f32.gmra.mrb[0].mxu0 %v277
  %v642 = vpop.f32.mrb[0].mxu0
  %v643 = vadd.f32 %v111, %v642
  %v644 = vpop.f32.mrb[0].mxu0
  %645 = vmatprep.mubr.f32.mxu0 0.0
  %646 = vmatmul.mubr.f32.gmra.mrb[0].mxu0 %v280
  %v647 = vpop.f32.mrb[0].mxu0
  %v648 = vadd.f32 %v111, %v647
  %v649 = vpop.f32.mrb[0].mxu0
  %650 = vmatprep.mubr.f32.mxu0 0.0
  %651 = vmatmul.mubr.f32.gmra.mrb[0].mxu0 %v283
  %v652 = vpop.f32.mrb[0].mxu0
  %v653 = vadd.f32 %v111, %v652
  %v654 = vpop.f32.mrb[0].mxu0
  %655 = vmatprep.mubr.f32.mxu0 0.0
  %656 = vmatmul.mubr.f32.gmra.mrb[0].mxu0 %v286
  %v657 = vpop.f32.mrb[0].mxu0
  %v658 = vadd.f32 %v111, %v657
  %v659 = vpop.f32.mrb[0].mxu0
  %660 = vmatprep.mubr.f32.mxu0 0.0
  %661 = vmatmul.mubr.f32.gmra.mrb[0].mxu0 %v289
  %v662 = vpop.f32.mrb[0].mxu0
  %v663 = vadd.f32 %v111, %v662
  %v664 = vpop.f32.mrb[0].mxu0
  %665 = vmatprep.mubr.f32.mxu0 0.0
  %666 = vmatmul.mubr.f32.gmra.mrb[0].mxu0 %v292
  %v667 = vpop.f32.mrb[0].mxu0
  %v668 = vadd.f32 %v111, %v667
  %v669 = vpop.f32.mrb[0].mxu0
  %670 = vmatprep.mubr.f32.mxu0 0.0
  %671 = vmatmul.mubr.f32.gmra.mrb[0].mxu0 %v295
  %v672 = vpop.f32.mrb[0].mxu0
  %v673 = vadd.f32 %v111, %v672
  %v674 = vpop.f32.mrb[0].mxu0
  %675 = vmatprep.mubr.f32.mxu0 0.0
  %676 = vmatmul.mubr.f32.gmra.mrb[0].mxu0 %v298
  %v677 = vpop.f32.mrb[0].mxu0
  %v678 = vadd.f32 %v111, %v677
  %v679 = vpop.f32.mrb[0].mxu0
  %680 = vmatprep.mubr.f32.mxu0 0.0
  %681 = vmatmul.mubr.f32.gmra.mrb[0].mxu0 %v301
  %v682 = vpop.f32.mrb[0].mxu0
  %v683 = vadd.f32 %v111, %v682
  %v684 = vpop.f32.mrb[0].mxu0
  %685 = vmatprep.mubr.f32.mxu0 0.0
  %686 = vmatmul.mubr.f32.gmra.mrb[0].mxu0 %v304
  %v687 = vpop.f32.mrb[0].mxu0
  %v688 = vadd.f32 %v111, %v687
  %v689 = vpop.f32.mrb[0].mxu0
  %690 = vdwg.mxu0
  %v691 = vld [vmem:[%s5] sm:$0xff]
  %v692 = vld [vmem:[%s5 + $0x8] sm:$0xff]
  %v693 = vld [vmem:[%s5 + $0x10] sm:$0xff]
  %v694 = vld [vmem:[%s5 + $0x18] sm:$0xff]
  %v695 = vld [vmem:[%s5 + $0x20] sm:$0xff]
  %v696 = vld [vmem:[%s5 + $0x28] sm:$0xff]
  %v697 = vld [vmem:[%s5 + $0x30] sm:$0xff]
  %v698 = vld [vmem:[%s5 + $0x38] sm:$0xff]
  %v699 = vld [vmem:[%s5 + $0x40] sm:$0xff]
  %v700 = vld [vmem:[%s5 + $0x48] sm:$0xff]
  %v701 = vld [vmem:[%s5 + $0x50] sm:$0xff]
  %v702 = vld [vmem:[%s5 + $0x58] sm:$0xff]
  %v703 = vld [vmem:[%s5 + $0x60] sm:$0xff]
  %v704 = vld [vmem:[%s5 + $0x68] sm:$0xff]
  %v705 = vld [vmem:[%s5 + $0x70] sm:$0xff]
  %v706 = vld [vmem:[%s5 + $0x78] sm:$0xff]
  %v707 = vld [vmem:[%s5 + $0x80] sm:$0xff]
  %v708 = vld [vmem:[%s5 + $0x88] sm:$0xff]
  %v709 = vld [vmem:[%s5 + $0x90] sm:$0xff]
  %v710 = vld [vmem:[%s5 + $0x98] sm:$0xff]
  %v711 = vld [vmem:[%s5 + $0xa0] sm:$0xff]
  %v712 = vld [vmem:[%s5 + $0xa8] sm:$0xff]
  %v713 = vld [vmem:[%s5 + $0xb0] sm:$0xff]
  %v714 = vld [vmem:[%s5 + $0xb8] sm:$0xff]
  %v715 = vld [vmem:[%s5 + $0xc0] sm:$0xff]
  %v716 = vld [vmem:[%s5 + $0xc8] sm:$0xff]
  %v717 = vld [vmem:[%s5 + $0xd0] sm:$0xff]
  %v718 = vld [vmem:[%s5 + $0xd8] sm:$0xff]
  %v719 = vld [vmem:[%s5 + $0xe0] sm:$0xff]
  %v720 = vld [vmem:[%s5 + $0xe8] sm:$0xff]
  %v721 = vld [vmem:[%s5 + $0xf0] sm:$0xff]
  %v722 = vld [vmem:[%s5 + $0xf8] sm:$0xff]
  %723 = vmatprep.subr.mxu0 %v692
  %724 = vmatpush1.msra.mxu0 %v691
  %725 = vmatprep.subr.mxu0 %v694
  %726 = vmatpush1.msra.mxu0 %v693
  %727 = vmatprep.subr.mxu0 %v696
  %728 = vmatpush1.msra.mxu0 %v695
  %729 = vmatprep.subr.mxu0 %v698
  %730 = vmatpush1.msra.mxu0 %v697
  %731 = vmatprep.subr.mxu0 %v700
  %732 = vmatpush1.msra.mxu0 %v699
  %733 = vmatprep.subr.mxu0 %v702
  %734 = vmatpush1.msra.mxu0 %v701
  %735 = vmatprep.subr.mxu0 %v704
  %736 = vmatpush1.msra.mxu0 %v703
  %737 = vmatprep.subr.mxu0 %v706
  %738 = vmatpush1.msra.mxu0 %v705
  %739 = vmatprep.subr.mxu0 %v708
  %740 = vmatpush1.msra.mxu0 %v707
  %741 = vmatprep.subr.mxu0 %v710
  %742 = vmatpush1.msra.mxu0 %v709
  %743 = vmatprep.subr.mxu0 %v712
  %744 = vmatpush1.msra.mxu0 %v711
  %745 = vmatprep.subr.mxu0 %v714
  %746 = vmatpush1.msra.mxu0 %v713
  %747 = vmatprep.subr.mxu0 %v716
  %748 = vmatpush1.msra.mxu0 %v715
  %749 = vmatprep.subr.mxu0 %v718
  %750 = vmatpush1.msra.mxu0 %v717
  %751 = vmatprep.subr.mxu0 %v720
  %752 = vmatpush1.msra.mxu0 %v719
  %753 = vmatprep.subr.mxu0 %v722
  %754 = vmatpush1.msra.mxu0 %v721
  %755 = vmatprep.subr.mxu0 0.0
  %756 = vmatpush1.msra.mxu0 0.0
  %757 = vmatprep.subr.mxu0 0.0
  %758 = vmatpush1.msra.mxu0 0.0
  %759 = vmatprep.subr.mxu0 0.0
  %760 = vmatpush1.msra.mxu0 0.0
  %761 = vmatprep.subr.mxu0 0.0
  %762 = vmatpush1.msra.mxu0 0.0
  %763 = vmatprep.subr.mxu0 0.0
  %764 = vmatpush1.msra.mxu0 0.0
  %765 = vmatprep.subr.mxu0 0.0
  %766 = vmatpush1.msra.mxu0 0.0
  %767 = vmatprep.subr.mxu0 0.0
  %768 = vmatpush1.msra.mxu0 0.0
  %769 = vmatprep.subr.mxu0 0.0
  %770 = vmatpush1.msra.mxu0 0.0
  %771 = vmatprep.subr.mxu0 0.0
  %772 = vmatpush1.msra.mxu0 0.0
  %773 = vmatprep.subr.mxu0 0.0
  %774 = vmatpush1.msra.mxu0 0.0
  %775 = vmatprep.subr.mxu0 0.0
  %776 = vmatpush1.msra.mxu0 0.0
  %777 = vmatprep.subr.mxu0 0.0
  %778 = vmatpush1.msra.mxu0 0.0
  %779 = vmatprep.subr.mxu0 0.0
  %780 = vmatpush1.msra.mxu0 0.0
  %781 = vmatprep.subr.mxu0 0.0
  %782 = vmatpush1.msra.mxu0 0.0
  %783 = vmatprep.subr.mxu0 0.0
  %784 = vmatpush1.msra.mxu0 0.0
  %785 = vmatprep.subr.mxu0 0.0
  %786 = vmatpush1.msra.mxu0 0.0
  %787 = vmatprep.mubr.f32.mxu0 0.0
  %788 = vmatmul.mubr.f32.gmra.mrb[0].mxu0 %v373
  %v789 = vpop.f32.mrb[0].mxu0
  %v790 = vadd.f32 0.0, %v789
  %v791 = vpop.f32.mrb[0].mxu0
  %v792 = vadd.f32 0.0, %v791
  %793 = vmatprep.mubr.f32.mxu0 0.0
  %794 = vmatmul.mubr.f32.gmra.mrb[0].mxu0 %v378
  %v795 = vpop.f32.mrb[0].mxu0
  %v796 = vadd.f32 0.0, %v795
  %v797 = vpop.f32.mrb[0].mxu0
  %v798 = vadd.f32 0.0, %v797
  %799 = vmatprep.mubr.f32.mxu0 0.0
  %800 = vmatmul.mubr.f32.gmra.mrb[0].mxu0 %v383
  %v801 = vpop.f32.mrb[0].mxu0
  %v802 = vadd.f32 0.0, %v801
  %v803 = vpop.f32.mrb[0].mxu0
  %v804 = vadd.f32 0.0, %v803
  %805 = vmatprep.mubr.f32.mxu0 0.0
  %806 = vmatmul.mubr.f32.gmra.mrb[0].mxu0 %v388
  %v807 = vpop.f32.mrb[0].mxu0
  %v808 = vadd.f32 0.0, %v807
  %v809 = vpop.f32.mrb[0].mxu0
  %v810 = vadd.f32 0.0, %v809
  %811 = vmatprep.mubr.f32.mxu0 0.0
  %812 = vmatmul.mubr.f32.gmra.mrb[0].mxu0 %v393
  %v813 = vpop.f32.mrb[0].mxu0
  %v814 = vadd.f32 0.0, %v813
  %v815 = vpop.f32.mrb[0].mxu0
  %v816 = vadd.f32 0.0, %v815
  %817 = vmatprep.mubr.f32.mxu0 0.0
  %818 = vmatmul.mubr.f32.gmra.mrb[0].mxu0 %v398
  %v819 = vpop.f32.mrb[0].mxu0
  %v820 = vadd.f32 0.0, %v819
  %v821 = vpop.f32.mrb[0].mxu0
  %v822 = vadd.f32 0.0, %v821
  %823 = vmatprep.mubr.f32.mxu0 0.0
  %824 = vmatmul.mubr.f32.gmra.mrb[0].mxu0 %v403
  %v825 = vpop.f32.mrb[0].mxu0
  %v826 = vadd.f32 0.0, %v825
  %v827 = vpop.f32.mrb[0].mxu0
  %v828 = vadd.f32 0.0, %v827
  %829 = vmatprep.mubr.f32.mxu0 0.0
  %830 = vmatmul.mubr.f32.gmra.mrb[0].mxu0 %v408
  %v831 = vpop.f32.mrb[0].mxu0
  %v832 = vadd.f32 0.0, %v831
  %v833 = vpop.f32.mrb[0].mxu0
  %v834 = vadd.f32 0.0, %v833
  %835 = vmatprep.mubr.f32.mxu0 0.0
  %836 = vmatmul.mubr.f32.gmra.mrb[0].mxu0 %v413
  %v837 = vpop.f32.mrb[0].mxu0
  %v838 = vadd.f32 0.0, %v837
  %v839 = vpop.f32.mrb[0].mxu0
  %v840 = vadd.f32 0.0, %v839
  %841 = vmatprep.mubr.f32.mxu0 0.0
  %842 = vmatmul.mubr.f32.gmra.mrb[0].mxu0 %v418
  %v843 = vpop.f32.mrb[0].mxu0
  %v844 = vadd.f32 0.0, %v843
  %v845 = vpop.f32.mrb[0].mxu0
  %v846 = vadd.f32 0.0, %v845
  %847 = vmatprep.mubr.f32.mxu0 0.0
  %848 = vmatmul.mubr.f32.gmra.mrb[0].mxu0 %v423
  %v849 = vpop.f32.mrb[0].mxu0
  %v850 = vadd.f32 0.0, %v849
  %v851 = vpop.f32.mrb[0].mxu0
  %v852 = vadd.f32 0.0, %v851
  %853 = vmatprep.mubr.f32.mxu0 0.0
  %854 = vmatmul.mubr.f32.gmra.mrb[0].mxu0 %v428
  %v855 = vpop.f32.mrb[0].mxu0
  %v856 = vadd.f32 0.0, %v855
  %v857 = vpop.f32.mrb[0].mxu0
  %v858 = vadd.f32 0.0, %v857
  %859 = vmatprep.mubr.f32.mxu0 0.0
  %860 = vmatmul.mubr.f32.gmra.mrb[0].mxu0 %v433
  %v861 = vpop.f32.mrb[0].mxu0
  %v862 = vadd.f32 0.0, %v861
  %v863 = vpop.f32.mrb[0].mxu0
  %v864 = vadd.f32 0.0, %v863
  %865 = vmatprep.mubr.f32.mxu0 0.0
  %866 = vmatmul.mubr.f32.gmra.mrb[0].mxu0 %v438
  %v867 = vpop.f32.mrb[0].mxu0
  %v868 = vadd.f32 0.0, %v867
  %v869 = vpop.f32.mrb[0].mxu0
  %v870 = vadd.f32 0.0, %v869
  %871 = vmatprep.mubr.f32.mxu0 0.0
  %872 = vmatmul.mubr.f32.gmra.mrb[0].mxu0 %v443
  %v873 = vpop.f32.mrb[0].mxu0
  %v874 = vadd.f32 0.0, %v873
  %v875 = vpop.f32.mrb[0].mxu0
  %v876 = vadd.f32 0.0, %v875
  %877 = vmatprep.mubr.f32.mxu0 0.0
  %878 = vmatmul.mubr.f32.gmra.mrb[0].mxu0 %v448
  %v879 = vpop.f32.mrb[0].mxu0
  %v880 = vadd.f32 0.0, %v879
  %v881 = vpop.f32.mrb[0].mxu0
  %v882 = vadd.f32 0.0, %v881
  %883 = vmatprep.mubr.f32.mxu0 0.0
  %884 = vmatmul.mubr.f32.gmra.mrb[0].mxu0 %v453
  %v885 = vpop.f32.mrb[0].mxu0
  %v886 = vadd.f32 0.0, %v885
  %v887 = vpop.f32.mrb[0].mxu0
  %v888 = vadd.f32 0.0, %v887
  %889 = vmatprep.mubr.f32.mxu0 0.0
  %890 = vmatmul.mubr.f32.gmra.mrb[0].mxu0 %v458
  %v891 = vpop.f32.mrb[0].mxu0
  %v892 = vadd.f32 0.0, %v891
  %v893 = vpop.f32.mrb[0].mxu0
  %v894 = vadd.f32 0.0, %v893
  %895 = vmatprep.mubr.f32.mxu0 0.0
  %896 = vmatmul.mubr.f32.gmra.mrb[0].mxu0 %v463
  %v897 = vpop.f32.mrb[0].mxu0
  %v898 = vadd.f32 0.0, %v897
  %v899 = vpop.f32.mrb[0].mxu0
  %v900 = vadd.f32 0.0, %v899
  %901 = vmatprep.mubr.f32.mxu0 0.0
  %902 = vmatmul.mubr.f32.gmra.mrb[0].mxu0 %v468
  %v903 = vpop.f32.mrb[0].mxu0
  %v904 = vadd.f32 0.0, %v903
  %v905 = vpop.f32.mrb[0].mxu0
  %v906 = vadd.f32 0.0, %v905
  %907 = vmatprep.mubr.f32.mxu0 0.0
  %908 = vmatmul.mubr.f32.gmra.mrb[0].mxu0 %v473
  %v909 = vpop.f32.mrb[0].mxu0
  %v910 = vadd.f32 0.0, %v909
  %v911 = vpop.f32.mrb[0].mxu0
  %v912 = vadd.f32 0.0, %v911
  %913 = vmatprep.mubr.f32.mxu0 0.0
  %914 = vmatmul.mubr.f32.gmra.mrb[0].mxu0 %v478
  %v915 = vpop.f32.mrb[0].mxu0
  %v916 = vadd.f32 0.0, %v915
  %v917 = vpop.f32.mrb[0].mxu0
  %v918 = vadd.f32 0.0, %v917
  %919 = vmatprep.mubr.f32.mxu0 0.0
  %920 = vmatmul.mubr.f32.gmra.mrb[0].mxu0 %v483
  %v921 = vpop.f32.mrb[0].mxu0
  %v922 = vadd.f32 0.0, %v921
  %v923 = vpop.f32.mrb[0].mxu0
  %v924 = vadd.f32 0.0, %v923
  %925 = vmatprep.mubr.f32.mxu0 0.0
  %926 = vmatmul.mubr.f32.gmra.mrb[0].mxu0 %v488
  %v927 = vpop.f32.mrb[0].mxu0
  %v928 = vadd.f32 0.0, %v927
  %v929 = vpop.f32.mrb[0].mxu0
  %v930 = vadd.f32 0.0, %v929
  %931 = vmatprep.mubr.f32.mxu0 0.0
  %932 = vmatmul.mubr.f32.gmra.mrb[0].mxu0 %v493
  %v933 = vpop.f32.mrb[0].mxu0
  %v934 = vadd.f32 0.0, %v933
  %v935 = vpop.f32.mrb[0].mxu0
  %v936 = vadd.f32 0.0, %v935
  %937 = vmatprep.mubr.f32.mxu0 0.0
  %938 = vmatmul.mubr.f32.gmra.mrb[0].mxu0 %v498
  %v939 = vpop.f32.mrb[0].mxu0
  %v940 = vadd.f32 0.0, %v939
  %v941 = vpop.f32.mrb[0].mxu0
  %v942 = vadd.f32 0.0, %v941
  %943 = vmatprep.mubr.f32.mxu0 0.0
  %944 = vmatmul.mubr.f32.gmra.mrb[0].mxu0 %v503
  %v945 = vpop.f32.mrb[0].mxu0
  %v946 = vadd.f32 0.0, %v945
  %v947 = vpop.f32.mrb[0].mxu0
  %v948 = vadd.f32 0.0, %v947
  %949 = vmatprep.mubr.f32.mxu0 0.0
  %950 = vmatmul.mubr.f32.gmra.mrb[0].mxu0 %v508
  %v951 = vpop.f32.mrb[0].mxu0
  %v952 = vadd.f32 0.0, %v951
  %v953 = vpop.f32.mrb[0].mxu0
  %v954 = vadd.f32 0.0, %v953
  %955 = vmatprep.mubr.f32.mxu0 0.0
  %956 = vmatmul.mubr.f32.gmra.mrb[0].mxu0 %v513
  %v957 = vpop.f32.mrb[0].mxu0
  %v958 = vadd.f32 0.0, %v957
  %v959 = vpop.f32.mrb[0].mxu0
  %v960 = vadd.f32 0.0, %v959
  %961 = vmatprep.mubr.f32.mxu0 0.0
  %962 = vmatmul.mubr.f32.gmra.mrb[0].mxu0 %v518
  %v963 = vpop.f32.mrb[0].mxu0
  %v964 = vadd.f32 0.0, %v963
  %v965 = vpop.f32.mrb[0].mxu0
  %v966 = vadd.f32 0.0, %v965
  %967 = vmatprep.mubr.f32.mxu0 0.0
  %968 = vmatmul.mubr.f32.gmra.mrb[0].mxu0 %v523
  %v969 = vpop.f32.mrb[0].mxu0
  %v970 = vadd.f32 0.0, %v969
  %v971 = vpop.f32.mrb[0].mxu0
  %v972 = vadd.f32 0.0, %v971
  %973 = vmatprep.mubr.f32.mxu0 0.0
  %974 = vmatmul.mubr.f32.gmra.mrb[0].mxu0 %v528
  %v975 = vpop.f32.mrb[0].mxu0
  %v976 = vadd.f32 0.0, %v975
  %v977 = vpop.f32.mrb[0].mxu0
  %v978 = vadd.f32 0.0, %v977
  %979 = vmatprep.mubr.f32.mxu0 0.0
  %980 = vmatmul.mubr.f32.gmra.mrb[0].mxu0 %v533
  %v981 = vpop.f32.mrb[0].mxu0
  %v982 = vadd.f32 0.0, %v981
  %v983 = vpop.f32.mrb[0].mxu0
  %v984 = vadd.f32 0.0, %v983
  %985 = vmatprep.mubr.f32.mxu0 0.0
  %986 = vmatmul.mubr.f32.gmra.mrb[0].mxu0 %v538
  %v987 = vpop.f32.mrb[0].mxu0
  %v988 = vadd.f32 0.0, %v987
  %v989 = vpop.f32.mrb[0].mxu0
  %v990 = vadd.f32 0.0, %v989
  %991 = vmatprep.mubr.f32.mxu0 0.0
  %992 = vmatmul.mubr.f32.gmra.mrb[0].mxu0 %v543
  %v993 = vpop.f32.mrb[0].mxu0
  %v994 = vadd.f32 0.0, %v993
  %v995 = vpop.f32.mrb[0].mxu0
  %v996 = vadd.f32 0.0, %v995
  %997 = vmatprep.mubr.f32.mxu0 0.0
  %998 = vmatmul.mubr.f32.gmra.mrb[0].mxu0 %v548
  %v999 = vpop.f32.mrb[0].mxu0
  %v1000 = vadd.f32 0.0, %v999
  %v1001 = vpop.f32.mrb[0].mxu0
  %v1002 = vadd.f32 0.0, %v1001
  %1003 = vmatprep.mubr.f32.mxu0 0.0
  %1004 = vmatmul.mubr.f32.gmra.mrb[0].mxu0 %v553
  %v1005 = vpop.f32.mrb[0].mxu0
  %v1006 = vadd.f32 0.0, %v1005
  %v1007 = vpop.f32.mrb[0].mxu0
  %v1008 = vadd.f32 0.0, %v1007
  %1009 = vmatprep.mubr.f32.mxu0 0.0
  %1010 = vmatmul.mubr.f32.gmra.mrb[0].mxu0 %v558
  %v1011 = vpop.f32.mrb[0].mxu0
  %v1012 = vadd.f32 0.0, %v1011
  %v1013 = vpop.f32.mrb[0].mxu0
  %v1014 = vadd.f32 0.0, %v1013
  %1015 = vmatprep.mubr.f32.mxu0 0.0
  %1016 = vmatmul.mubr.f32.gmra.mrb[0].mxu0 %v563
  %v1017 = vpop.f32.mrb[0].mxu0
  %v1018 = vadd.f32 0.0, %v1017
  %v1019 = vpop.f32.mrb[0].mxu0
  %v1020 = vadd.f32 0.0, %v1019
  %1021 = vmatprep.mubr.f32.mxu0 0.0
  %1022 = vmatmul.mubr.f32.gmra.mrb[0].mxu0 %v568
  %v1023 = vpop.f32.mrb[0].mxu0
  %v1024 = vadd.f32 0.0, %v1023
  %v1025 = vpop.f32.mrb[0].mxu0
  %v1026 = vadd.f32 0.0, %v1025
  %1027 = vmatprep.mubr.f32.mxu0 0.0
  %1028 = vmatmul.mubr.f32.gmra.mrb[0].mxu0 %v573
  %v1029 = vpop.f32.mrb[0].mxu0
  %v1030 = vadd.f32 0.0, %v1029
  %v1031 = vpop.f32.mrb[0].mxu0
  %v1032 = vadd.f32 0.0, %v1031
  %1033 = vmatprep.mubr.f32.mxu0 0.0
  %1034 = vmatmul.mubr.f32.gmra.mrb[0].mxu0 %v578
  %v1035 = vpop.f32.mrb[0].mxu0
  %v1036 = vadd.f32 0.0, %v1035
  %v1037 = vpop.f32.mrb[0].mxu0
  %v1038 = vadd.f32 0.0, %v1037
  %1039 = vmatprep.mubr.f32.mxu0 0.0
  %1040 = vmatmul.mubr.f32.gmra.mrb[0].mxu0 %v583
  %v1041 = vpop.f32.mrb[0].mxu0
  %v1042 = vadd.f32 0.0, %v1041
  %v1043 = vpop.f32.mrb[0].mxu0
  %v1044 = vadd.f32 0.0, %v1043
  %1045 = vmatprep.mubr.f32.mxu0 0.0
  %1046 = vmatmul.mubr.f32.gmra.mrb[0].mxu0 %v588
  %v1047 = vpop.f32.mrb[0].mxu0
  %v1048 = vadd.f32 0.0, %v1047
  %v1049 = vpop.f32.mrb[0].mxu0
  %v1050 = vadd.f32 0.0, %v1049
  %1051 = vmatprep.mubr.f32.mxu0 0.0
  %1052 = vmatmul.mubr.f32.gmra.mrb[0].mxu0 %v593
  %v1053 = vpop.f32.mrb[0].mxu0
  %v1054 = vadd.f32 0.0, %v1053
  %v1055 = vpop.f32.mrb[0].mxu0
  %v1056 = vadd.f32 0.0, %v1055
  %1057 = vmatprep.mubr.f32.mxu0 0.0
  %1058 = vmatmul.mubr.f32.gmra.mrb[0].mxu0 %v598
  %v1059 = vpop.f32.mrb[0].mxu0
  %v1060 = vadd.f32 0.0, %v1059
  %v1061 = vpop.f32.mrb[0].mxu0
  %v1062 = vadd.f32 0.0, %v1061
  %1063 = vmatprep.mubr.f32.mxu0 0.0
  %1064 = vmatmul.mubr.f32.gmra.mrb[0].mxu0 %v603
  %v1065 = vpop.f32.mrb[0].mxu0
  %v1066 = vadd.f32 0.0, %v1065
  %v1067 = vpop.f32.mrb[0].mxu0
  %v1068 = vadd.f32 0.0, %v1067
  %1069 = vmatprep.mubr.f32.mxu0 0.0
  %1070 = vmatmul.mubr.f32.gmra.mrb[0].mxu0 %v608
  %v1071 = vpop.f32.mrb[0].mxu0
  %v1072 = vadd.f32 0.0, %v1071
  %v1073 = vpop.f32.mrb[0].mxu0
  %v1074 = vadd.f32 0.0, %v1073
  %1075 = vmatprep.mubr.f32.mxu0 0.0
  %1076 = vmatmul.mubr.f32.gmra.mrb[0].mxu0 %v613
  %v1077 = vpop.f32.mrb[0].mxu0
  %v1078 = vadd.f32 0.0, %v1077
  %v1079 = vpop.f32.mrb[0].mxu0
  %v1080 = vadd.f32 0.0, %v1079
  %1081 = vmatprep.mubr.f32.mxu0 0.0
  %1082 = vmatmul.mubr.f32.gmra.mrb[0].mxu0 %v618
  %v1083 = vpop.f32.mrb[0].mxu0
  %v1084 = vadd.f32 0.0, %v1083
  %v1085 = vpop.f32.mrb[0].mxu0
  %v1086 = vadd.f32 0.0, %v1085
  %1087 = vmatprep.mubr.f32.mxu0 0.0
  %1088 = vmatmul.mubr.f32.gmra.mrb[0].mxu0 %v623
  %v1089 = vpop.f32.mrb[0].mxu0
  %v1090 = vadd.f32 0.0, %v1089
  %v1091 = vpop.f32.mrb[0].mxu0
  %v1092 = vadd.f32 0.0, %v1091
  %1093 = vmatprep.mubr.f32.mxu0 0.0
  %1094 = vmatmul.mubr.f32.gmra.mrb[0].mxu0 %v628
  %v1095 = vpop.f32.mrb[0].mxu0
  %v1096 = vadd.f32 0.0, %v1095
  %v1097 = vpop.f32.mrb[0].mxu0
  %v1098 = vadd.f32 0.0, %v1097
  %1099 = vmatprep.mubr.f32.mxu0 0.0
  %1100 = vmatmul.mubr.f32.gmra.mrb[0].mxu0 %v633
  %v1101 = vpop.f32.mrb[0].mxu0
  %v1102 = vadd.f32 0.0, %v1101
  %v1103 = vpop.f32.mrb[0].mxu0
  %v1104 = vadd.f32 0.0, %v1103
  %1105 = vmatprep.mubr.f32.mxu0 0.0
  %1106 = vmatmul.mubr.f32.gmra.mrb[0].mxu0 %v638
  %v1107 = vpop.f32.mrb[0].mxu0
  %v1108 = vadd.f32 0.0, %v1107
  %v1109 = vpop.f32.mrb[0].mxu0
  %v1110 = vadd.f32 0.0, %v1109
  %1111 = vmatprep.mubr.f32.mxu0 0.0
  %1112 = vmatmul.mubr.f32.gmra.mrb[0].mxu0 %v643
  %v1113 = vpop.f32.mrb[0].mxu0
  %v1114 = vadd.f32 0.0, %v1113
  %v1115 = vpop.f32.mrb[0].mxu0
  %v1116 = vadd.f32 0.0, %v1115
  %1117 = vmatprep.mubr.f32.mxu0 0.0
  %1118 = vmatmul.mubr.f32.gmra.mrb[0].mxu0 %v648
  %v1119 = vpop.f32.mrb[0].mxu0
  %v1120 = vadd.f32 0.0, %v1119
  %v1121 = vpop.f32.mrb[0].mxu0
  %v1122 = vadd.f32 0.0, %v1121
  %1123 = vmatprep.mubr.f32.mxu0 0.0
  %1124 = vmatmul.mubr.f32.gmra.mrb[0].mxu0 %v653
  %v1125 = vpop.f32.mrb[0].mxu0
  %v1126 = vadd.f32 0.0, %v1125
  %v1127 = vpop.f32.mrb[0].mxu0
  %v1128 = vadd.f32 0.0, %v1127
  %1129 = vmatprep.mubr.f32.mxu0 0.0
  %1130 = vmatmul.mubr.f32.gmra.mrb[0].mxu0 %v658
  %v1131 = vpop.f32.mrb[0].mxu0
  %v1132 = vadd.f32 0.0, %v1131
  %v1133 = vpop.f32.mrb[0].mxu0
  %v1134 = vadd.f32 0.0, %v1133
  %1135 = vmatprep.mubr.f32.mxu0 0.0
  %1136 = vmatmul.mubr.f32.gmra.mrb[0].mxu0 %v663
  %v1137 = vpop.f32.mrb[0].mxu0
  %v1138 = vadd.f32 0.0, %v1137
  %v1139 = vpop.f32.mrb[0].mxu0
  %v1140 = vadd.f32 0.0, %v1139
  %1141 = vmatprep.mubr.f32.mxu0 0.0
  %1142 = vmatmul.mubr.f32.gmra.mrb[0].mxu0 %v668
  %v1143 = vpop.f32.mrb[0].mxu0
  %v1144 = vadd.f32 0.0, %v1143
  %v1145 = vpop.f32.mrb[0].mxu0
  %v1146 = vadd.f32 0.0, %v1145
  %1147 = vmatprep.mubr.f32.mxu0 0.0
  %1148 = vmatmul.mubr.f32.gmra.mrb[0].mxu0 %v673
  %v1149 = vpop.f32.mrb[0].mxu0
  %v1150 = vadd.f32 0.0, %v1149
  %v1151 = vpop.f32.mrb[0].mxu0
  %v1152 = vadd.f32 0.0, %v1151
  %1153 = vmatprep.mubr.f32.mxu0 0.0
  %1154 = vmatmul.mubr.f32.gmra.mrb[0].mxu0 %v678
  %v1155 = vpop.f32.mrb[0].mxu0
  %v1156 = vadd.f32 0.0, %v1155
  %v1157 = vpop.f32.mrb[0].mxu0
  %v1158 = vadd.f32 0.0, %v1157
  %1159 = vmatprep.mubr.f32.mxu0 0.0
  %1160 = vmatmul.mubr.f32.gmra.mrb[0].mxu0 %v683
  %v1161 = vpop.f32.mrb[0].mxu0
  %v1162 = vadd.f32 0.0, %v1161
  %v1163 = vpop.f32.mrb[0].mxu0
  %v1164 = vadd.f32 0.0, %v1163
  %1165 = vmatprep.mubr.f32.mxu0 0.0
  %1166 = vmatmul.mubr.f32.gmra.mrb[0].mxu0 %v688
  %v1167 = vpop.f32.mrb[0].mxu0
  %v1168 = vadd.f32 0.0, %v1167
  %v1169 = vpop.f32.mrb[0].mxu0
  %v1170 = vadd.f32 0.0, %v1169
  %1171 = vdwg.mxu0
  %v1172 = vld [vmem:[%s3] sm:$0xff]
  %v1173 = vld [vmem:[%s3 + $0x8] sm:$0xff]
  %1174 = vmatprep.subr.mxu0 0.0
  %1175 = vmatpush1.xpose.msra.mxu0 %v790
  %1176 = vmatprep.subr.mxu0 0.0
  %1177 = vmatpush1.xpose.msra.mxu0 %v796
  %1178 = vmatprep.subr.mxu0 0.0
  %1179 = vmatpush1.xpose.msra.mxu0 %v802
  %1180 = vmatprep.subr.mxu0 0.0
  %1181 = vmatpush1.xpose.msra.mxu0 %v808
  %1182 = vmatprep.subr.mxu0 0.0
  %1183 = vmatpush1.xpose.msra.mxu0 %v814
  %1184 = vmatprep.subr.mxu0 0.0
  %1185 = vmatpush1.xpose.msra.mxu0 %v820
  %1186 = vmatprep.subr.mxu0 0.0
  %1187 = vmatpush1.xpose.msra.mxu0 %v826
  %1188 = vmatprep.subr.mxu0 0.0
  %1189 = vmatpush1.xpose.msra.mxu0 %v832
  %1190 = vmatprep.subr.mxu0 0.0
  %1191 = vmatpush1.xpose.msra.mxu0 %v838
  %1192 = vmatprep.subr.mxu0 0.0
  %1193 = vmatpush1.xpose.msra.mxu0 %v844
  %1194 = vmatprep.subr.mxu0 0.0
  %1195 = vmatpush1.xpose.msra.mxu0 %v850
  %1196 = vmatprep.subr.mxu0 0.0
  %1197 = vmatpush1.xpose.msra.mxu0 %v856
  %1198 = vmatprep.subr.mxu0 0.0
  %1199 = vmatpush1.xpose.msra.mxu0 %v862
  %1200 = vmatprep.subr.mxu0 0.0
  %1201 = vmatpush1.xpose.msra.mxu0 %v868
  %1202 = vmatprep.subr.mxu0 0.0
  %1203 = vmatpush1.xpose.msra.mxu0 %v874
  %1204 = vmatprep.subr.mxu0 0.0
  %1205 = vmatpush1.xpose.msra.mxu0 %v880
  %1206 = vmatprep.subr.mxu0 0.0
  %1207 = vmatpush1.xpose.msra.mxu0 %v886
  %1208 = vmatprep.subr.mxu0 0.0
  %1209 = vmatpush1.xpose.msra.mxu0 %v892
  %1210 = vmatprep.subr.mxu0 0.0
  %1211 = vmatpush1.xpose.msra.mxu0 %v898
  %1212 = vmatprep.subr.mxu0 0.0
  %1213 = vmatpush1.xpose.msra.mxu0 %v904
  %1214 = vmatprep.subr.mxu0 0.0
  %1215 = vmatpush1.xpose.msra.mxu0 %v910
  %1216 = vmatprep.subr.mxu0 0.0
  %1217 = vmatpush1.xpose.msra.mxu0 %v916
  %1218 = vmatprep.subr.mxu0 0.0
  %1219 = vmatpush1.xpose.msra.mxu0 %v922
  %1220 = vmatprep.subr.mxu0 0.0
  %1221 = vmatpush1.xpose.msra.mxu0 %v928
  %1222 = vmatprep.subr.mxu0 0.0
  %1223 = vmatpush1.xpose.msra.mxu0 %v934
  %1224 = vmatprep.subr.mxu0 0.0
  %1225 = vmatpush1.xpose.msra.mxu0 %v940
  %1226 = vmatprep.subr.mxu0 0.0
  %1227 = vmatpush1.xpose.msra.mxu0 %v946
  %1228 = vmatprep.subr.mxu0 0.0
  %1229 = vmatpush1.xpose.msra.mxu0 %v952
  %1230 = vmatprep.subr.mxu0 0.0
  %1231 = vmatpush1.xpose.msra.mxu0 %v958
  %1232 = vmatprep.subr.mxu0 0.0
  %1233 = vmatpush1.xpose.msra.mxu0 %v964
  %1234 = vmatprep.subr.mxu0 0.0
  %1235 = vmatpush1.xpose.msra.mxu0 %v970
  %1236 = vmatprep.subr.mxu0 0.0
  %1237 = vmatpush1.xpose.msra.mxu0 %v976
  %1238 = vmatprep.mubr.f32.mxu0 0.0
  %1239 = vmatmul.mubr.f32.gmra.mrb[0].mxu0 %v1172
  %v1240 = vpop.f32.mrb[0].mxu0
  %v1241 = vadd.f32 0.0, %v1240
  %v1242 = vpop.f32.mrb[0].mxu0
  %v1243 = vadd.f32 0.0, %v1242
  %1244 = vmatprep.mubr.f32.mxu0 0.0
  %1245 = vmatmul.mubr.f32.gmra.mrb[0].mxu0 %v1173
  %v1246 = vpop.f32.mrb[0].mxu0
  %v1247 = vadd.f32 0.0, %v1246
  %v1248 = vpop.f32.mrb[0].mxu0
  %v1249 = vadd.f32 0.0, %v1248
  %1250 = vdwg.mxu0
  %1251 = vmatprep.subr.mxu0 0.0
  %1252 = vmatpush1.xpose.msra.mxu0 %v982
  %1253 = vmatprep.subr.mxu0 0.0
  %1254 = vmatpush1.xpose.msra.mxu0 %v988
  %1255 = vmatprep.subr.mxu0 0.0
  %1256 = vmatpush1.xpose.msra.mxu0 %v994
  %1257 = vmatprep.subr.mxu0 0.0
  %1258 = vmatpush1.xpose.msra.mxu0 %v1000
  %1259 = vmatprep.subr.mxu0 0.0
  %1260 = vmatpush1.xpose.msra.mxu0 %v1006
  %1261 = vmatprep.subr.mxu0 0.0
  %1262 = vmatpush1.xpose.msra.mxu0 %v1012
  %1263 = vmatprep.subr.mxu0 0.0
  %1264 = vmatpush1.xpose.msra.mxu0 %v1018
  %1265 = vmatprep.subr.mxu0 0.0
  %1266 = vmatpush1.xpose.msra.mxu0 %v1024
  %1267 = vmatprep.subr.mxu0 0.0
  %1268 = vmatpush1.xpose.msra.mxu0 %v1030
  %1269 = vmatprep.subr.mxu0 0.0
  %1270 = vmatpush1.xpose.msra.mxu0 %v1036
  %1271 = vmatprep.subr.mxu0 0.0
  %1272 = vmatpush1.xpose.msra.mxu0 %v1042
  %1273 = vmatprep.subr.mxu0 0.0
  %1274 = vmatpush1.xpose.msra.mxu0 %v1048
  %1275 = vmatprep.subr.mxu0 0.0
  %1276 = vmatpush1.xpose.msra.mxu0 %v1054
  %1277 = vmatprep.subr.mxu0 0.0
  %1278 = vmatpush1.xpose.msra.mxu0 %v1060
  %1279 = vmatprep.subr.mxu0 0.0
  %1280 = vmatpush1.xpose.msra.mxu0 %v1066
  %1281 = vmatprep.subr.mxu0 0.0
  %1282 = vmatpush1.xpose.msra.mxu0 %v1072
  %1283 = vmatprep.subr.mxu0 0.0
  %1284 = vmatpush1.xpose.msra.mxu0 %v1078
  %1285 = vmatprep.subr.mxu0 0.0
  %1286 = vmatpush1.xpose.msra.mxu0 %v1084
  %1287 = vmatprep.subr.mxu0 0.0
  %1288 = vmatpush1.xpose.msra.mxu0 %v1090
  %1289 = vmatprep.subr.mxu0 0.0
  %1290 = vmatpush1.xpose.msra.mxu0 %v1096
  %1291 = vmatprep.subr.mxu0 0.0
  %1292 = vmatpush1.xpose.msra.mxu0 %v1102
  %1293 = vmatprep.subr.mxu0 0.0
  %1294 = vmatpush1.xpose.msra.mxu0 %v1108
  %1295 = vmatprep.subr.mxu0 0.0
  %1296 = vmatpush1.xpose.msra.mxu0 %v1114
  %1297 = vmatprep.subr.mxu0 0.0
  %1298 = vmatpush1.xpose.msra.mxu0 %v1120
  %1299 = vmatprep.subr.mxu0 0.0
  %1300 = vmatpush1.xpose.msra.mxu0 %v1126
  %1301 = vmatprep.subr.mxu0 0.0
  %1302 = vmatpush1.xpose.msra.mxu0 %v1132
  %1303 = vmatprep.subr.mxu0 0.0
  %1304 = vmatpush1.xpose.msra.mxu0 %v1138
  %1305 = vmatprep.subr.mxu0 0.0
  %1306 = vmatpush1.xpose.msra.mxu0 %v1144
  %1307 = vmatprep.subr.mxu0 0.0
  %1308 = vmatpush1.xpose.msra.mxu0 %v1150
  %1309 = vmatprep.subr.mxu0 0.0
  %1310 = vmatpush1.xpose.msra.mxu0 %v1156
  %1311 = vmatprep.subr.mxu0 0.0
  %1312 = vmatpush1.xpose.msra.mxu0 %v1162
  %1313 = vmatprep.subr.mxu0 0.0
  %1314 = vmatpush1.xpose.msra.mxu0 %v1168
  %1315 = vmatprep.mubr.f32.mxu0 0.0
  %1316 = vmatmul.mubr.f32.gmra.mrb[0].mxu0 %v1172
  %v1317 = vpop.f32.mrb[0].mxu0
  %v1318 = vadd.f32 0.0, %v1317
  %v1319 = vpop.f32.mrb[0].mxu0
  %v1320 = vadd.f32 0.0, %v1319
  %1321 = vmatprep.mubr.f32.mxu0 0.0
  %1322 = vmatmul.mubr.f32.gmra.mrb[0].mxu0 %v1173
  %v1323 = vpop.f32.mrb[0].mxu0
  %v1324 = vadd.f32 0.0, %v1323
  %v1325 = vpop.f32.mrb[0].mxu0
  %v1326 = vadd.f32 0.0, %v1325
  %1327 = vdwg.mxu0
  %v1328 = vmax.f32 %v1241, %v1243
  %1329 = vmax.xlane.f32.xlu0 %v1328
  %v1330 = vpop.xlane.xlu0 %1329
  %v1331 = vmax.f32 %v1247, %v1249
  %1332 = vmax.xlane.f32.xlu0 %v1331
  %v1333 = vpop.xlane.xlu0 %1332
  %v1334 = vsub.f32 %v1241, %v1330
  %v1335 = vsub.f32 %v1243, %v1330
  %v1336 = vsub.f32 %v1247, %v1333
  %v1337 = vsub.f32 %v1249, %v1333
  %v1338 = vmul.f32 %v1334, 1.442695
  %v1339 = vpow.pop %v1338
  %v1340 = vmul.f32 %v1335, 1.442695
  %v1341 = vpow.pop %v1340
  %v1342 = vmul.f32 %v1336, 1.442695
  %v1343 = vpow.pop %v1342
  %v1344 = vmul.f32 %v1337, 1.442695
  %v1345 = vpow.pop %v1344
  %v1346 = vadd.f32 %v1339, %v1341
  %1347 = vadd.xlane.f32.xlu0 %v1346
  %v1348 = vpop.xlane.xlu0 %1347
  %v1349 = vadd.f32 %v1343, %v1345
  %1350 = vadd.xlane.f32.xlu0 %v1349
  %v1351 = vpop.xlane.xlu0 %1350
  %v1352 = vrcp.pop %v1348
  %v1353 = vrcp.pop %v1351
  %v1354 = vmul.f32 %v1339, %v1352
  %v1355 = vmul.f32 %v1341, %v1352
  %v1356 = vmul.f32 %v1343, %v1353
  %v1357 = vmul.f32 %v1345, %v1353
  %1358 = vmatprep.subr.mxu0 0.0
  %1359 = vmatpush1.msra.mxu0 %v792
  %1360 = vmatprep.subr.mxu0 0.0
  %1361 = vmatpush1.msra.mxu0 %v798
  %1362 = vmatprep.subr.mxu0 0.0
  %1363 = vmatpush1.msra.mxu0 %v804
  %1364 = vmatprep.subr.mxu0 0.0
  %1365 = vmatpush1.msra.mxu0 %v810
  %1366 = vmatprep.subr.mxu0 0.0
  %1367 = vmatpush1.msra.mxu0 %v816
  %1368 = vmatprep.subr.mxu0 0.0
  %1369 = vmatpush1.msra.mxu0 %v822
  %1370 = vmatprep.subr.mxu0 0.0
  %1371 = vmatpush1.msra.mxu0 %v828
  %1372 = vmatprep.subr.mxu0 0.0
  %1373 = vmatpush1.msra.mxu0 %v834
  %1374 = vmatprep.subr.mxu0 0.0
  %1375 = vmatpush1.msra.mxu0 %v840
  %1376 = vmatprep.subr.mxu0 0.0
  %1377 = vmatpush1.msra.mxu0 %v846
  %1378 = vmatprep.subr.mxu0 0.0
  %1379 = vmatpush1.msra.mxu0 %v852
  %1380 = vmatprep.subr.mxu0 0.0
  %1381 = vmatpush1.msra.mxu0 %v858
  %1382 = vmatprep.subr.mxu0 0.0
  %1383 = vmatpush1.msra.mxu0 %v864
  %1384 = vmatprep.subr.mxu0 0.0
  %1385 = vmatpush1.msra.mxu0 %v870
  %1386 = vmatprep.subr.mxu0 0.0
  %1387 = vmatpush1.msra.mxu0 %v876
  %1388 = vmatprep.subr.mxu0 0.0
  %1389 = vmatpush1.msra.mxu0 %v882
  %1390 = vmatprep.subr.mxu0 0.0
  %1391 = vmatpush1.msra.mxu0 %v888
  %1392 = vmatprep.subr.mxu0 0.0
  %1393 = vmatpush1.msra.mxu0 %v894
  %1394 = vmatprep.subr.mxu0 0.0
  %1395 = vmatpush1.msra.mxu0 %v900
  %1396 = vmatprep.subr.mxu0 0.0
  %1397 = vmatpush1.msra.mxu0 %v906
  %1398 = vmatprep.subr.mxu0 0.0
  %1399 = vmatpush1.msra.mxu0 %v912
  %1400 = vmatprep.subr.mxu0 0.0
  %1401 = vmatpush1.msra.mxu0 %v918
  %1402 = vmatprep.subr.mxu0 0.0
  %1403 = vmatpush1.msra.mxu0 %v924
  %1404 = vmatprep.subr.mxu0 0.0
  %1405 = vmatpush1.msra.mxu0 %v930
  %1406 = vmatprep.subr.mxu0 0.0
  %1407 = vmatpush1.msra.mxu0 %v936
  %1408 = vmatprep.subr.mxu0 0.0
  %1409 = vmatpush1.msra.mxu0 %v942
  %1410 = vmatprep.subr.mxu0 0.0
  %1411 = vmatpush1.msra.mxu0 %v948
  %1412 = vmatprep.subr.mxu0 0.0
  %1413 = vmatpush1.msra.mxu0 %v954
  %1414 = vmatprep.subr.mxu0 0.0
  %1415 = vmatpush1.msra.mxu0 %v960
  %1416 = vmatprep.subr.mxu0 0.0
  %1417 = vmatpush1.msra.mxu0 %v966
  %1418 = vmatprep.subr.mxu0 0.0
  %1419 = vmatpush1.msra.mxu0 %v972
  %1420 = vmatprep.subr.mxu0 0.0
  %1421 = vmatpush1.msra.mxu0 %v978
  %1422 = vmatprep.mubr.f32.mxu0 %v1355
  %1423 = vmatmul.mubr.f32.gmra.mrb[0].mxu0 %v1354
  %v1424 = vpop.f32.mrb[0].mxu0
  %v1425 = vadd.f32 0.0, %v1424
  %v1426 = vpop.f32.mrb[0].mxu0
  %1427 = vmatprep.mubr.f32.mxu0 %v1357
  %1428 = vmatmul.mubr.f32.gmra.mrb[0].mxu0 %v1356
  %v1429 = vpop.f32.mrb[0].mxu0
  %v1430 = vadd.f32 0.0, %v1429
  %v1431 = vpop.f32.mrb[0].mxu0
  %1432 = vdwg.mxu0
  %v1433 = vmax.f32 %v1318, %v1320
  %1434 = vmax.xlane.f32.xlu0 %v1433
  %v1435 = vpop.xlane.xlu0 %1434
  %v1436 = vmax.f32 %v1324, %v1326
  %1437 = vmax.xlane.f32.xlu0 %v1436
  %v1438 = vpop.xlane.xlu0 %1437
  %v1439 = vsub.f32 %v1318, %v1435
  %v1440 = vsub.f32 %v1320, %v1435
  %v1441 = vsub.f32 %v1324, %v1438
  %v1442 = vsub.f32 %v1326, %v1438
  %v1443 = vmul.f32 %v1439, 1.442695
  %v1444 = vpow.pop %v1443
  %v1445 = vmul.f32 %v1440, 1.442695
  %v1446 = vpow.pop %v1445
  %v1447 = vmul.f32 %v1441, 1.442695
  %v1448 = vpow.pop %v1447
  %v1449 = vmul.f32 %v1442, 1.442695
  %v1450 = vpow.pop %v1449
  %v1451 = vadd.f32 %v1444, %v1446
  %1452 = vadd.xlane.f32.xlu0 %v1451
  %v1453 = vpop.xlane.xlu0 %1452
  %v1454 = vadd.f32 %v1448, %v1450
  %1455 = vadd.xlane.f32.xlu0 %v1454
  %v1456 = vpop.xlane.xlu0 %1455
  %v1457 = vrcp.pop %v1453
  %v1458 = vrcp.pop %v1456
  %v1459 = vmul.f32 %v1444, %v1457
  %v1460 = vmul.f32 %v1446, %v1457
  %v1461 = vmul.f32 %v1448, %v1458
  %v1462 = vmul.f32 %v1450, %v1458
  %1463 = vmatprep.subr.mxu0 0.0
  %1464 = vmatpush1.msra.mxu0 %v984
  %1465 = vmatprep.subr.mxu0 0.0
  %1466 = vmatpush1.msra.mxu0 %v990
  %1467 = vmatprep.subr.mxu0 0.0
  %1468 = vmatpush1.msra.mxu0 %v996
  %1469 = vmatprep.subr.mxu0 0.0
  %1470 = vmatpush1.msra.mxu0 %v1002
  %1471 = vmatprep.subr.mxu0 0.0
  %1472 = vmatpush1.msra.mxu0 %v1008
  %1473 = vmatprep.subr.mxu0 0.0
  %1474 = vmatpush1.msra.mxu0 %v1014
  %1475 = vmatprep.subr.mxu0 0.0
  %1476 = vmatpush1.msra.mxu0 %v1020
  %1477 = vmatprep.subr.mxu0 0.0
  %1478 = vmatpush1.msra.mxu0 %v1026
  %1479 = vmatprep.subr.mxu0 0.0
  %1480 = vmatpush1.msra.mxu0 %v1032
  %1481 = vmatprep.subr.mxu0 0.0
  %1482 = vmatpush1.msra.mxu0 %v1038
  %1483 = vmatprep.subr.mxu0 0.0
  %1484 = vmatpush1.msra.mxu0 %v1044
  %1485 = vmatprep.subr.mxu0 0.0
  %1486 = vmatpush1.msra.mxu0 %v1050
  %1487 = vmatprep.subr.mxu0 0.0
  %1488 = vmatpush1.msra.mxu0 %v1056
  %1489 = vmatprep.subr.mxu0 0.0
  %1490 = vmatpush1.msra.mxu0 %v1062
  %1491 = vmatprep.subr.mxu0 0.0
  %1492 = vmatpush1.msra.mxu0 %v1068
  %1493 = vmatprep.subr.mxu0 0.0
  %1494 = vmatpush1.msra.mxu0 %v1074
  %1495 = vmatprep.subr.mxu0 0.0
  %1496 = vmatpush1.msra.mxu0 %v1080
  %1497 = vmatprep.subr.mxu0 0.0
  %1498 = vmatpush1.msra.mxu0 %v1086
  %1499 = vmatprep.subr.mxu0 0.0
  %1500 = vmatpush1.msra.mxu0 %v1092
  %1501 = vmatprep.subr.mxu0 0.0
  %1502 = vmatpush1.msra.mxu0 %v1098
  %1503 = vmatprep.subr.mxu0 0.0
  %1504 = vmatpush1.msra.mxu0 %v1104
  %1505 = vmatprep.subr.mxu0 0.0
  %1506 = vmatpush1.msra.mxu0 %v1110
  %1507 = vmatprep.subr.mxu0 0.0
  %1508 = vmatpush1.msra.mxu0 %v1116
  %1509 = vmatprep.subr.mxu0 0.0
  %1510 = vmatpush1.msra.mxu0 %v1122
  %1511 = vmatprep.subr.mxu0 0.0
  %1512 = vmatpush1.msra.mxu0 %v1128
  %1513 = vmatprep.subr.mxu0 0.0
  %1514 = vmatpush1.msra.mxu0 %v1134
  %1515 = vmatprep.subr.mxu0 0.0
  %1516 = vmatpush1.msra.mxu0 %v1140
  %1517 = vmatprep.subr.mxu0 0.0
  %1518 = vmatpush1.msra.mxu0 %v1146
  %1519 = vmatprep.subr.mxu0 0.0
  %1520 = vmatpush1.msra.mxu0 %v1152
  %1521 = vmatprep.subr.mxu0 0.0
  %1522 = vmatpush1.msra.mxu0 %v1158
  %1523 = vmatprep.subr.mxu0 0.0
  %1524 = vmatpush1.msra.mxu0 %v1164
  %1525 = vmatprep.subr.mxu0 0.0
  %1526 = vmatpush1.msra.mxu0 %v1170
  %1527 = vmatprep.mubr.f32.mxu0 %v1460
  %1528 = vmatmul.mubr.f32.gmra.mrb[0].mxu0 %v1459
  %v1529 = vpop.f32.mrb[0].mxu0
  %v1530 = vadd.f32 0.0, %v1529
  %v1531 = vpop.f32.mrb[0].mxu0
  %1532 = vmatprep.mubr.f32.mxu0 %v1462
  %1533 = vmatmul.mubr.f32.gmra.mrb[0].mxu0 %v1461
  %v1534 = vpop.f32.mrb[0].mxu0
  %v1535 = vadd.f32 0.0, %v1534
  %v1536 = vpop.f32.mrb[0].mxu0
  %1537 = vdwg.mxu0
  %v1538 = vld [vmem:[%s6] sm:$0xff]
  %v1539 = vld [vmem:[%s6 + $0x8] sm:$0xff]
  %v1540 = vld [vmem:[%s6 + $0x10] sm:$0xff]
  %v1541 = vld [vmem:[%s6 + $0x18] sm:$0xff]
  %v1542 = vld [vmem:[%s6 + $0x20] sm:$0xff]
  %v1543 = vld [vmem:[%s6 + $0x28] sm:$0xff]
  %v1544 = vld [vmem:[%s6 + $0x30] sm:$0xff]
  %v1545 = vld [vmem:[%s6 + $0x38] sm:$0xff]
  %v1546 = vld [vmem:[%s6 + $0x40] sm:$0xff]
  %v1547 = vld [vmem:[%s6 + $0x48] sm:$0xff]
  %v1548 = vld [vmem:[%s6 + $0x50] sm:$0xff]
  %v1549 = vld [vmem:[%s6 + $0x58] sm:$0xff]
  %v1550 = vld [vmem:[%s6 + $0x60] sm:$0xff]
  %v1551 = vld [vmem:[%s6 + $0x68] sm:$0xff]
  %v1552 = vld [vmem:[%s6 + $0x70] sm:$0xff]
  %v1553 = vld [vmem:[%s6 + $0x78] sm:$0xff]
  %v1554 = vld [vmem:[%s4] sm:$0xff]
  %v1555 = vld [vmem:[%s4 + $0x8] sm:$0xff]
  %v1556 = vld [vmem:[%s4 + $0x10] sm:$0xff]
  %v1557 = vld [vmem:[%s4 + $0x18] sm:$0xff]
  %1558 = vmatprep.subr.mxu0 0.0
  %1559 = vmatpush1.msra.mxu0 %v1538
  %1560 = vmatprep.subr.mxu0 0.0
  %1561 = vmatpush1.msra.mxu0 %v1539
  %1562 = vmatprep.subr.mxu0 0.0
  %1563 = vmatpush1.msra.mxu0 %v1540
  %1564 = vmatprep.subr.mxu0 0.0
  %1565 = vmatpush1.msra.mxu0 %v1541
  %1566 = vmatprep.subr.mxu0 0.0
  %1567 = vmatpush1.msra.mxu0 %v1542
  %1568 = vmatprep.subr.mxu0 0.0
  %1569 = vmatpush1.msra.mxu0 %v1543
  %1570 = vmatprep.subr.mxu0 0.0
  %1571 = vmatpush1.msra.mxu0 %v1544
  %1572 = vmatprep.subr.mxu0 0.0
  %1573 = vmatpush1.msra.mxu0 %v1545
  %1574 = vmatprep.subr.mxu0 0.0
  %1575 = vmatpush1.msra.mxu0 %v1546
  %1576 = vmatprep.subr.mxu0 0.0
  %1577 = vmatpush1.msra.mxu0 %v1547
  %1578 = vmatprep.subr.mxu0 0.0
  %1579 = vmatpush1.msra.mxu0 %v1548
  %1580 = vmatprep.subr.mxu0 0.0
  %1581 = vmatpush1.msra.mxu0 %v1549
  %1582 = vmatprep.subr.mxu0 0.0
  %1583 = vmatpush1.msra.mxu0 %v1550
  %1584 = vmatprep.subr.mxu0 0.0
  %1585 = vmatpush1.msra.mxu0 %v1551
  %1586 = vmatprep.subr.mxu0 0.0
  %1587 = vmatpush1.msra.mxu0 %v1552
  %1588 = vmatprep.subr.mxu0 0.0
  %1589 = vmatpush1.msra.mxu0 %v1553
  %1590 = vmatprep.subr.mxu0 0.0
  %1591 = vmatpush1.msra.mxu0 0.0
  %1592 = vmatprep.subr.mxu0 0.0
  %1593 = vmatpush1.msra.mxu0 0.0
  %1594 = vmatprep.subr.mxu0 0.0
  %1595 = vmatpush1.msra.mxu0 0.0
  %1596 = vmatprep.subr.mxu0 0.0
  %1597 = vmatpush1.msra.mxu0 0.0
  %1598 = vmatprep.subr.mxu0 0.0
  %1599 = vmatpush1.msra.mxu0 0.0
  %1600 = vmatprep.subr.mxu0 0.0
  %1601 = vmatpush1.msra.mxu0 0.0
  %1602 = vmatprep.subr.mxu0 0.0
  %1603 = vmatpush1.msra.mxu0 0.0
  %1604 = vmatprep.subr.mxu0 0.0
  %1605 = vmatpush1.msra.mxu0 0.0
  %1606 = vmatprep.subr.mxu0 0.0
  %1607 = vmatpush1.msra.mxu0 0.0
  %1608 = vmatprep.subr.mxu0 0.0
  %1609 = vmatpush1.msra.mxu0 0.0
  %1610 = vmatprep.subr.mxu0 0.0
  %1611 = vmatpush1.msra.mxu0 0.0
  %1612 = vmatprep.subr.mxu0 0.0
  %1613 = vmatpush1.msra.mxu0 0.0
  %1614 = vmatprep.subr.mxu0 0.0
  %1615 = vmatpush1.msra.mxu0 0.0
  %1616 = vmatprep.subr.mxu0 0.0
  %1617 = vmatpush1.msra.mxu0 0.0
  %1618 = vmatprep.subr.mxu0 0.0
  %1619 = vmatpush1.msra.mxu0 0.0
  %1620 = vmatprep.subr.mxu0 0.0
  %1621 = vmatpush1.msra.mxu0 0.0
  %1622 = vmatprep.mubr.f32.mxu0 0.0
  %1623 = vmatmul.mubr.f32.gmra.mrb[0].mxu0 %v1425
  %v1624 = vpop.f32.mrb[0].mxu0
  %v1625 = vadd.f32 %v1554, %v1624
  %v1626 = vpop.f32.mrb[0].mxu0
  %1627 = vmatprep.mubr.f32.mxu0 0.0
  %1628 = vmatmul.mubr.f32.gmra.mrb[0].mxu0 %v1430
  %v1629 = vpop.f32.mrb[0].mxu0
  %v1630 = vadd.f32 %v1555, %v1629
  %v1631 = vpop.f32.mrb[0].mxu0
  %1632 = vmatprep.mubr.f32.mxu0 0.0
  %1633 = vmatmul.mubr.f32.gmra.mrb[0].mxu0 %v1530
  %v1634 = vpop.f32.mrb[0].mxu0
  %v1635 = vadd.f32 %v1556, %v1634
  %v1636 = vpop.f32.mrb[0].mxu0
  %1637 = vmatprep.mubr.f32.mxu0 0.0
  %1638 = vmatmul.mubr.f32.gmra.mrb[0].mxu0 %v1535
  %v1639 = vpop.f32.mrb[0].mxu0
  %v1640 = vadd.f32 %v1557, %v1639
  %v1641 = vpop.f32.mrb[0].mxu0
  %1642 = vdwg.mxu0
  %v1643 = vld [vmem:[%s7] sm:$0xff]
  %v1644 = vld [vmem:[%s7 + $0x8] sm:$0xff]
  %v1645 = vld [vmem:[%s7 + $0x10] sm:$0xff]
  %v1646 = vld [vmem:[%s7 + $0x18] sm:$0xff]
  %v1647 = vld [vmem:[%s7 + $0x20] sm:$0xff]
  %v1648 = vld [vmem:[%s7 + $0x28] sm:$0xff]
  %v1649 = vld [vmem:[%s7 + $0x30] sm:$0xff]
  %v1650 = vld [vmem:[%s7 + $0x38] sm:$0xff]
  %v1651 = vld [vmem:[%s7 + $0x40] sm:$0xff]
  %v1652 = vld [vmem:[%s7 + $0x48] sm:$0xff]
  %v1653 = vld [vmem:[%s7 + $0x50] sm:$0xff]
  %v1654 = vld [vmem:[%s7 + $0x58] sm:$0xff]
  %v1655 = vld [vmem:[%s7 + $0x60] sm:$0xff]
  %v1656 = vld [vmem:[%s7 + $0x68] sm:$0xff]
  %v1657 = vld [vmem:[%s7 + $0x70] sm:$0xff]
  %v1658 = vld [vmem:[%s7 + $0x78] sm:$0xff]
  %v1659 = vld [vmem:[%s8] sm:$0x1]
  %v1661 = vlaneseq
  %v1662 = vshrl.u32 %v1661, 7
  %v1663 = vsub.s32 0, %v1662
  %v1664 = vrot.slane %v1659, %v1663
  %1666 = vmatprep.subr.mxu0 0.0
  %1667 = vmatpush1.msra.mxu0 %v1643
  %1668 = vmatprep.subr.mxu0 0.0
  %1669 = vmatpush1.msra.mxu0 %v1644
  %1670 = vmatprep.subr.mxu0 0.0
  %1671 = vmatpush1.msra.mxu0 %v1645
  %1672 = vmatprep.subr.mxu0 0.0
  %1673 = vmatpush1.msra.mxu0 %v1646
  %1674 = vmatprep.subr.mxu0 0.0
  %1675 = vmatpush1.msra.mxu0 %v1647
  %1676 = vmatprep.subr.mxu0 0.0
  %1677 = vmatpush1.msra.mxu0 %v1648
  %1678 = vmatprep.subr.mxu0 0.0
  %1679 = vmatpush1.msra.mxu0 %v1649
  %1680 = vmatprep.subr.mxu0 0.0
  %1681 = vmatpush1.msra.mxu0 %v1650
  %1682 = vmatprep.subr.mxu0 0.0
  %1683 = vmatpush1.msra.mxu0 %v1651
  %1684 = vmatprep.subr.mxu0 0.0
  %1685 = vmatpush1.msra.mxu0 %v1652
  %1686 = vmatprep.subr.mxu0 0.0
  %1687 = vmatpush1.msra.mxu0 %v1653
  %1688 = vmatprep.subr.mxu0 0.0
  %1689 = vmatpush1.msra.mxu0 %v1654
  %1690 = vmatprep.subr.mxu0 0.0
  %1691 = vmatpush1.msra.mxu0 %v1655
  %1692 = vmatprep.subr.mxu0 0.0
  %1693 = vmatpush1.msra.mxu0 %v1656
  %1694 = vmatprep.subr.mxu0 0.0
  %1695 = vmatpush1.msra.mxu0 %v1657
  %1696 = vmatprep.subr.mxu0 0.0
  %1697 = vmatpush1.msra.mxu0 %v1658
  %1698 = vmatprep.subr.mxu0 0.0
  %1699 = vmatpush1.msra.mxu0 0.0
  %1700 = vmatprep.subr.mxu0 0.0
  %1701 = vmatpush1.msra.mxu0 0.0
  %1702 = vmatprep.subr.mxu0 0.0
  %1703 = vmatpush1.msra.mxu0 0.0
  %1704 = vmatprep.subr.mxu0 0.0
  %1705 = vmatpush1.msra.mxu0 0.0
  %1706 = vmatprep.subr.mxu0 0.0
  %1707 = vmatpush1.msra.mxu0 0.0
  %1708 = vmatprep.subr.mxu0 0.0
  %1709 = vmatpush1.msra.mxu0 0.0
  %1710 = vmatprep.subr.mxu0 0.0
  %1711 = vmatpush1.msra.mxu0 0.0
  %1712 = vmatprep.subr.mxu0 0.0
  %1713 = vmatpush1.msra.mxu0 0.0
  %1714 = vmatprep.subr.mxu0 0.0
  %1715 = vmatpush1.msra.mxu0 0.0
  %1716 = vmatprep.subr.mxu0 0.0
  %1717 = vmatpush1.msra.mxu0 0.0
  %1718 = vmatprep.subr.mxu0 0.0
  %1719 = vmatpush1.msra.mxu0 0.0
  %1720 = vmatprep.subr.mxu0 0.0
  %1721 = vmatpush1.msra.mxu0 0.0
  %1722 = vmatprep.subr.mxu0 0.0
  %1723 = vmatpush1.msra.mxu0 0.0
  %1724 = vmatprep.subr.mxu0 0.0
  %1725 = vmatpush1.msra.mxu0 0.0
  %1726 = vmatprep.subr.mxu0 0.0
  %1727 = vmatpush1.msra.mxu0 0.0
  %1728 = vmatprep.subr.mxu0 0.0
  %1729 = vmatpush1.msra.mxu0 0.0
  %1730 = vmatprep.mubr.f32.mxu0 0.0
  %1731 = vmatmul.mubr.f32.gmra.mrb[0].mxu0 %v1625
  %v1732 = vpop.f32.mrb[0].mxu0
  %v1733 = vadd.f32 %v1664, %v1732
  %v1734 = vpop.f32.mrb[0].mxu0
  %1735 = vmatprep.mubr.f32.mxu0 0.0
  %1736 = vmatmul.mubr.f32.gmra.mrb[0].mxu0 %v1630
  %v1737 = vpop.f32.mrb[0].mxu0
  %v1738 = vadd.f32 %v1664, %v1737
  %v1739 = vpop.f32.mrb[0].mxu0
  %1740 = vmatprep.mubr.f32.mxu0 0.0
  %1741 = vmatmul.mubr.f32.gmra.mrb[0].mxu0 %v1635
  %v1742 = vpop.f32.mrb[0].mxu0
  %v1743 = vadd.f32 %v1664, %v1742
  %v1744 = vpop.f32.mrb[0].mxu0
  %1745 = vmatprep.mubr.f32.mxu0 0.0
  %1746 = vmatmul.mubr.f32.gmra.mrb[0].mxu0 %v1640
  %v1747 = vpop.f32.mrb[0].mxu0
  %v1748 = vadd.f32 %v1664, %v1747
  %v1749 = vpop.f32.mrb[0].mxu0
  %1750 = vdwg.mxu0
  %v1751 = vmax.f32 %v1733, 0.0
  %v1752 = vmax.f32 %v1738, 0.0
  %v1753 = vmax.f32 %v1743, 0.0
  %v1754 = vmax.f32 %v1748, 0.0
  %v1755 = vld [vmem:[%s9] sm:$0xff]
  %v1756 = vld [vmem:[%s9 + $0x8] sm:$0xff]
  %v1757 = vld [vmem:[%s9 + $0x10] sm:$0xff]
  %v1758 = vld [vmem:[%s9 + $0x18] sm:$0xff]
  %v1759 = vld [vmem:[%s9 + $0x20] sm:$0xff]
  %v1760 = vld [vmem:[%s9 + $0x28] sm:$0xff]
  %v1761 = vld [vmem:[%s9 + $0x30] sm:$0xff]
  %v1762 = vld [vmem:[%s9 + $0x38] sm:$0xff]
  %v1763 = vld [vmem:[%s9 + $0x40] sm:$0xff]
  %v1764 = vld [vmem:[%s9 + $0x48] sm:$0xff]
  %v1765 = vld [vmem:[%s9 + $0x50] sm:$0xff]
  %v1766 = vld [vmem:[%s9 + $0x58] sm:$0xff]
  %v1767 = vld [vmem:[%s9 + $0x60] sm:$0xff]
  %v1768 = vld [vmem:[%s9 + $0x68] sm:$0xff]
  %v1769 = vld [vmem:[%s9 + $0x70] sm:$0xff]
  %v1770 = vld [vmem:[%s9 + $0x78] sm:$0xff]
  %v1771 = vld [vmem:[%s10] sm:$0xff]
  %v1772 = vld [vmem:[%s10 + $0x8] sm:$0xff]
  %v1773 = vld [vmem:[%s10 + $0x10] sm:$0xff]
  %v1774 = vld [vmem:[%s10 + $0x18] sm:$0xff]
  %v1775 = vld [vmem:[%s10 + $0x20] sm:$0xff]
  %v1776 = vld [vmem:[%s10 + $0x28] sm:$0xff]
  %v1777 = vld [vmem:[%s10 + $0x30] sm:$0xff]
  %v1778 = vld [vmem:[%s10 + $0x38] sm:$0xff]
  %v1779 = vld [vmem:[%s10 + $0x40] sm:$0xff]
  %v1780 = vld [vmem:[%s10 + $0x48] sm:$0xff]
  %v1781 = vld [vmem:[%s10 + $0x50] sm:$0xff]
  %v1782 = vld [vmem:[%s10 + $0x58] sm:$0xff]
  %v1783 = vld [vmem:[%s10 + $0x60] sm:$0xff]
  %v1784 = vld [vmem:[%s10 + $0x68] sm:$0xff]
  %v1785 = vld [vmem:[%s10 + $0x70] sm:$0xff]
  %v1786 = vld [vmem:[%s10 + $0x78] sm:$0xff]
  %1787 = vmatprep.subr.mxu0 0.0
  %1788 = vmatpush1.msra.mxu0 %v1771
  %1789 = vmatprep.subr.mxu0 0.0
  %1790 = vmatpush1.msra.mxu0 %v1772
  %1791 = vmatprep.subr.mxu0 0.0
  %1792 = vmatpush1.msra.mxu0 %v1773
  %1793 = vmatprep.subr.mxu0 0.0
  %1794 = vmatpush1.msra.mxu0 %v1774
  %1795 = vmatprep.subr.mxu0 0.0
  %1796 = vmatpush1.msra.mxu0 %v1775
  %1797 = vmatprep.subr.mxu0 0.0
  %1798 = vmatpush1.msra.mxu0 %v1776
  %1799 = vmatprep.subr.mxu0 0.0
  %1800 = vmatpush1.msra.mxu0 %v1777
  %1801 = vmatprep.subr.mxu0 0.0
  %1802 = vmatpush1.msra.mxu0 %v1778
  %1803 = vmatprep.subr.mxu0 0.0
  %1804 = vmatpush1.msra.mxu0 %v1779
  %1805 = vmatprep.subr.mxu0 0.0
  %1806 = vmatpush1.msra.mxu0 %v1780
  %1807 = vmatprep.subr.mxu0 0.0
  %1808 = vmatpush1.msra.mxu0 %v1781
  %1809 = vmatprep.subr.mxu0 0.0
  %1810 = vmatpush1.msra.mxu0 %v1782
  %1811 = vmatprep.subr.mxu0 0.0
  %1812 = vmatpush1.msra.mxu0 %v1783
  %1813 = vmatprep.subr.mxu0 0.0
  %1814 = vmatpush1.msra.mxu0 %v1784
  %1815 = vmatprep.subr.mxu0 0.0
  %1816 = vmatpush1.msra.mxu0 %v1785
  %1817 = vmatprep.subr.mxu0 0.0
  %1818 = vmatpush1.msra.mxu0 %v1786
  %1819 = vmatprep.subr.mxu0 0.0
  %1820 = vmatpush1.msra.mxu0 0.0
  %1821 = vmatprep.subr.mxu0 0.0
  %1822 = vmatpush1.msra.mxu0 0.0
  %1823 = vmatprep.subr.mxu0 0.0
  %1824 = vmatpush1.msra.mxu0 0.0
  %1825 = vmatprep.subr.mxu0 0.0
  %1826 = vmatpush1.msra.mxu0 0.0
  %1827 = vmatprep.subr.mxu0 0.0
  %1828 = vmatpush1.msra.mxu0 0.0
  %1829 = vmatprep.subr.mxu0 0.0
  %1830 = vmatpush1.msra.mxu0 0.0
  %1831 = vmatprep.subr.mxu0 0.0
  %1832 = vmatpush1.msra.mxu0 0.0
  %1833 = vmatprep.subr.mxu0 0.0
  %1834 = vmatpush1.msra.mxu0 0.0
  %1835 = vmatprep.subr.mxu0 0.0
  %1836 = vmatpush1.msra.mxu0 0.0
  %1837 = vmatprep.subr.mxu0 0.0
  %1838 = vmatpush1.msra.mxu0 0.0
  %1839 = vmatprep.subr.mxu0 0.0
  %1840 = vmatpush1.msra.mxu0 0.0
  %1841 = vmatprep.subr.mxu0 0.0
  %1842 = vmatpush1.msra.mxu0 0.0
  %1843 = vmatprep.subr.mxu0 0.0
  %1844 = vmatpush1.msra.mxu0 0.0
  %1845 = vmatprep.subr.mxu0 0.0
  %1846 = vmatpush1.msra.mxu0 0.0
  %1847 = vmatprep.subr.mxu0 0.0
  %1848 = vmatpush1.msra.mxu0 0.0
  %1849 = vmatprep.subr.mxu0 0.0
  %1850 = vmatpush1.msra.mxu0 0.0
  %1851 = vmatprep.mubr.f32.mxu0 0.0
  %1852 = vmatmul.mubr.f32.gmra.mrb[0].mxu0 %v1751
  %v1853 = vpop.f32.mrb[0].mxu0
  %v1854 = vadd.f32 0.0, %v1853
  %v1855 = vpop.f32.mrb[0].mxu0
  %1856 = vmatprep.mubr.f32.mxu0 0.0
  %1857 = vmatmul.mubr.f32.gmra.mrb[0].mxu0 %v1752
  %v1858 = vpop.f32.mrb[0].mxu0
  %v1859 = vadd.f32 0.0, %v1858
  %v1860 = vpop.f32.mrb[0].mxu0
  %1861 = vmatprep.mubr.f32.mxu0 0.0
  %1862 = vmatmul.mubr.f32.gmra.mrb[0].mxu0 %v1753
  %v1863 = vpop.f32.mrb[0].mxu0
  %v1864 = vadd.f32 0.0, %v1863
  %v1865 = vpop.f32.mrb[0].mxu0
  %1866 = vmatprep.mubr.f32.mxu0 0.0
  %1867 = vmatmul.mubr.f32.gmra.mrb[0].mxu0 %v1754
  %v1868 = vpop.f32.mrb[0].mxu0
  %v1869 = vadd.f32 0.0, %v1868
  %v1870 = vpop.f32.mrb[0].mxu0
  %1871 = vdwg.mxu0
  %1872 = vmatprep.subr.mxu0 0.0
  %1873 = vmatpush1.msra.mxu0 %v1755
  %1874 = vmatprep.subr.mxu0 0.0
  %1875 = vmatpush1.msra.mxu0 %v1756
  %1876 = vmatprep.subr.mxu0 0.0
  %1877 = vmatpush1.msra.mxu0 %v1757
  %1878 = vmatprep.subr.mxu0 0.0
  %1879 = vmatpush1.msra.mxu0 %v1758
  %1880 = vmatprep.subr.mxu0 0.0
  %1881 = vmatpush1.msra.mxu0 %v1759
  %1882 = vmatprep.subr.mxu0 0.0
  %1883 = vmatpush1.msra.mxu0 %v1760
  %1884 = vmatprep.subr.mxu0 0.0
  %1885 = vmatpush1.msra.mxu0 %v1761
  %1886 = vmatprep.subr.mxu0 0.0
  %1887 = vmatpush1.msra.mxu0 %v1762
  %1888 = vmatprep.subr.mxu0 0.0
  %1889 = vmatpush1.msra.mxu0 %v1763
  %1890 = vmatprep.subr.mxu0 0.0
  %1891 = vmatpush1.msra.mxu0 %v1764
  %1892 = vmatprep.subr.mxu0 0.0
  %1893 = vmatpush1.msra.mxu0 %v1765
  %1894 = vmatprep.subr.mxu0 0.0
  %1895 = vmatpush1.msra.mxu0 %v1766
  %1896 = vmatprep.subr.mxu0 0.0
  %1897 = vmatpush1.msra.mxu0 %v1767
  %1898 = vmatprep.subr.mxu0 0.0
  %1899 = vmatpush1.msra.mxu0 %v1768
  %1900 = vmatprep.subr.mxu0 0.0
  %1901 = vmatpush1.msra.mxu0 %v1769
  %1902 = vmatprep.subr.mxu0 0.0
  %1903 = vmatpush1.msra.mxu0 %v1770
  %1904 = vmatprep.subr.mxu0 0.0
  %1905 = vmatpush1.msra.mxu0 0.0
  %1906 = vmatprep.subr.mxu0 0.0
  %1907 = vmatpush1.msra.mxu0 0.0
  %1908 = vmatprep.subr.mxu0 0.0
  %1909 = vmatpush1.msra.mxu0 0.0
  %1910 = vmatprep.subr.mxu0 0.0
  %1911 = vmatpush1.msra.mxu0 0.0
  %1912 = vmatprep.subr.mxu0 0.0
  %1913 = vmatpush1.msra.mxu0 0.0
  %1914 = vmatprep.subr.mxu0 0.0
  %1915 = vmatpush1.msra.mxu0 0.0
  %1916 = vmatprep.subr.mxu0 0.0
  %1917 = vmatpush1.msra.mxu0 0.0
  %1918 = vmatprep.subr.mxu0 0.0
  %1919 = vmatpush1.msra.mxu0 0.0
  %1920 = vmatprep.subr.mxu0 0.0
  %1921 = vmatpush1.msra.mxu0 0.0
  %1922 = vmatprep.subr.mxu0 0.0
  %1923 = vmatpush1.msra.mxu0 0.0
  %1924 = vmatprep.subr.mxu0 0.0
  %1925 = vmatpush1.msra.mxu0 0.0
  %1926 = vmatprep.subr.mxu0 0.0
  %1927 = vmatpush1.msra.mxu0 0.0
  %1928 = vmatprep.subr.mxu0 0.0
  %1929 = vmatpush1.msra.mxu0 0.0
  %1930 = vmatprep.subr.mxu0 0.0
  %1931 = vmatpush1.msra.mxu0 0.0
  %1932 = vmatprep.subr.mxu0 0.0
  %1933 = vmatpush1.msra.mxu0 0.0
  %1934 = vmatprep.subr.mxu0 0.0
  %1935 = vmatpush1.msra.mxu0 0.0
  %1936 = vmatprep.mubr.f32.mxu0 0.0
  %1937 = vmatmul.mubr.f32.gmra.mrb[0].mxu0 %v1625
  %v1938 = vpop.f32.mrb[0].mxu0
  %v1939 = vadd.f32 %v1854, %v1938
  %v1940 = vpop.f32.mrb[0].mxu0
  %1941 = vmatprep.mubr.f32.mxu0 0.0
  %1942 = vmatmul.mubr.f32.gmra.mrb[0].mxu0 %v1630
  %v1943 = vpop.f32.mrb[0].mxu0
  %v1944 = vadd.f32 %v1859, %v1943
  %v1945 = vpop.f32.mrb[0].mxu0
  %1946 = vmatprep.mubr.f32.mxu0 0.0
  %1947 = vmatmul.mubr.f32.gmra.mrb[0].mxu0 %v1635
  %v1948 = vpop.f32.mrb[0].mxu0
  %v1949 = vadd.f32 %v1864, %v1948
  %v1950 = vpop.f32.mrb[0].mxu0
  %1951 = vmatprep.mubr.f32.mxu0 0.0
  %1952 = vmatmul.mubr.f32.gmra.mrb[0].mxu0 %v1640
  %v1953 = vpop.f32.mrb[0].mxu0
  %v1954 = vadd.f32 %v1869, %v1953
  %v1955 = vpop.f32.mrb[0].mxu0
  %1956 = vdwg.mxu0
  %v1957 = vld [vmem:[%s11] sm:$0x1]
  %v1959 = vlaneseq
  %v1960 = vshrl.u32 %v1959, 7
  %v1961 = vsub.s32 0, %v1960
  %v1962 = vrot.slane %v1957, %v1961
  %v1964 = vadd.f32 %v1939, %v1962
  %v1965 = vadd.f32 %v1944, %v1962
  %v1966 = vadd.f32 %v1949, %v1962
  %v1967 = vadd.f32 %v1954, %v1962
  %v1968 = vlaneseq
  %v1969 = vand.u32 %v1968, 127
  %vm1970 = vcmp.ge.s32.totalorder %v1969, 9
  %vm1971 = vcmp.lt.s32.totalorder %v1969, 13
  %vm1972 = vmand %vm1970, %vm1971
  %v1973 = vxor.u32 %v1964, 2147483648
  %v1974 = vxor.u32 %v1965, 2147483648
  %v1975 = vxor.u32 %v1966, 2147483648
  %v1976 = vxor.u32 %v1967, 2147483648
  %v1977 = vmul.f32 %v1973, 1.442695
  %v1978 = vpow.pop %v1977
  %v1979 = vmul.f32 %v1974, 1.442695
  %v1980 = vpow.pop %v1979
  %v1981 = vmul.f32 %v1975, 1.442695
  %v1982 = vpow.pop %v1981
  %v1983 = vmul.f32 %v1976, 1.442695
  %v1984 = vpow.pop %v1983
  %v1985 = vadd.f32 %v1978, 1.0
  %v1986 = vadd.f32 %v1980, 1.0
  %v1987 = vadd.f32 %v1982, 1.0
  %v1988 = vadd.f32 %v1984, 1.0
  %v1989 = vrcp.pop %v1985
  %v1990 = vmul.f32 1.0, %v1989
  %v1991 = vrcp.pop %v1986
  %v1992 = vmul.f32 1.0, %v1991
  %v1993 = vrcp.pop %v1987
  %v1994 = vmul.f32 1.0, %v1993
  %v1995 = vrcp.pop %v1988
  %v1996 = vmul.f32 1.0, %v1995
  %v1997 = vsel %vm1972, %v1990, %v1964
  %v1998 = vsel %vm1972, %v1992, %v1965
  %v1999 = vsel %vm1972, %v1994, %v1966
  %v2000 = vsel %vm1972, %v1996, %v1967
  %2001 = vst [vmem:[%s12] sm:$0xff] %v1997
  %2002 = vst [vmem:[%s12 + $0x8] sm:$0xff] %v1998
  %2003 = vst [vmem:[%s12 + $0x10] sm:$0xff] %v1999
  %2004 = vst [vmem:[%s12 + $0x18] sm:$0xff] %v2000
  // Predicated region
  $region50: #{object_detection_forward.1} parent=0 // pred_check
    _
  $region51: #{object_detection_forward.1} parent=0 // pred_check_branch
    %2006 = sbr.rel (0) target = $region53
  $region52: #{object_detection_forward.1} parent=0 // pred_region
    _
  $region53: #{object_detection_forward.1} parent=0 // pred_fallthru
    _
  // Predicated region
  $region54: #{object_detection_forward.1} parent=0 // pred_check
    _
  $region55: #{object_detection_forward.1} parent=0 // pred_check_branch
    %2008 = sbr.rel (0) target = $region57
  $region56: #{object_detection_forward.1} parent=0 // pred_region
    _
  $region57: #{object_detection_forward.1} parent=0 // pred_fallthru
    _

</llo_original>
